<compile_context>
chip_gen: v7x
topology: tpu7x:2x2x1
jax: 0.10.0
libtpu: 0.0.40
codegen_flags: <defaults>
</compile_context>

<pallas_src>
import math

import jax
import jax.numpy as jnp
from jax.experimental import pallas as pl
from jax.experimental.pallas import tpu as pltpu


def _round_up(x, m):
    return (x + m - 1) // m * m


def _const_index_map(ndim):
    return lambda i: (0,) * ndim


# ----------------------------------------------------------------------------
# Fused whole-network kernel
# ----------------------------------------------------------------------------

def _make_tcn_kernel(meta, kernel_size, n_shifts, shift_to_idx):
    """meta: per-block static info [{'d', 'down', 'cout_p'}, ...]."""

    def kernel(x_ref, *refs):
        o_ref = refs[-1]
        s_refs = refs[:n_shifts]
        w_refs = refs[n_shifts:-1]

        def causal_shift(vb16, shift):
            # Exact causal shift by `shift` rows within each sequence, done as
            # a 0/1 matrix multiply on the MXU; rows with t < shift (and any
            # cross-sequence reads) are zero by construction of the matrix.
            s = s_refs[shift_to_idx[shift]][...]
            return jnp.dot(s, vb16,
                           preferred_element_type=jnp.float32).astype(jnp.bfloat16)

        def conv(vb16, w_ref, b_ref, d):
            # Dilated causal conv: out[t] = b + sum_j W[j] . v[t - (k-1-j)*d]
            # (padding=(k-1)*d + Chomp1d is exactly this causal window).
            acc = None
            for j in range(kernel_size):
                shift = (kernel_size - 1 - j) * d
                vt = vb16 if shift == 0 else causal_shift(vb16, shift)
                p = jnp.dot(vt, w_ref[j], preferred_element_type=jnp.float32)
                acc = p if acc is None else acc + p
            return acc + b_ref[...]

        x32 = x_ref[...]                                   # (rows, cin_p) f32
        wi = 0
        for m in meta:
            d, cout_p = m["d"], m["cout_p"]
            w1, b1, w2, b2 = w_refs[wi:wi + 4]
            wi += 4
            xb16 = x32.astype(jnp.bfloat16)
            pre = conv(xb16, w1, b1, d)        # (rows, cout_p | 2*cout_p) f32
            if m["down"]:
                # 1x1 downsample fused into conv1: [h_pre | res] along channels
                h_pre, res = pre[:, :cout_p], pre[:, cout_p:]
            else:
                h_pre, res = pre, x32
            h = jnp.maximum(h_pre, 0.0)                    # relu1
            # TODO(synk): Dropout(0.2) layers are identity (eval semantics).
            out = jnp.maximum(conv(h.astype(jnp.bfloat16), w2, b2, d), 0.0)  # relu2
            x32 = jnp.maximum(out + res, 0.0)              # residual + final ReLU
        o_ref[...] = x32.astype(o_ref.dtype)

    return kernel


def _vmem_limit_bytes(w_args, shift_mats, rows, cin_p, cout_p):
    const_bytes = sum(math.prod(a.shape) * a.dtype.itemsize
                      for a in list(w_args) + list(shift_mats))
    max_cp = max(int(a.shape[-1]) for a in w_args)
    io_bytes = 2 * rows * (cin_p + cout_p) * 4         # double-buffered x / out
    act_bytes = 8 * rows * max_cp * 4                  # in-kernel f32/bf16 temps
    need = int(2 * (const_bytes + io_bytes + act_bytes))
    # 48 MiB cap keeps headroom on v7x's 64 MiB VMEM; v5e/v6e have 128 MiB.
    return min(max(need, 32 * 1024 * 1024), 48 * 1024 * 1024)


def tcn_forward(params, x_ncl):
    """TemporalConvNet.forward.  x: (N, C, L)  (PyTorch Conv1d layout)."""
    blocks = params["blocks"]
    k = params["kernel_size"]
    N, cin, L = x_ncl.shape
    assert cin == blocks[0]["cin"]

    cin0_p = blocks[0]["cin_p"]
    cout = blocks[-1]["cout"]
    cout_p = blocks[-1]["cout_p"]

    Lp = _round_up(L, 8)
    # Whole sequences per grid step (dilated taps never cross a grid block);
    # aim for ~256 rows/step to amortize per-step pipeline overhead.
    nb = max(1, min(N, 256 // Lp))
    Nb = _round_up(N, nb)
    n_steps = Nb // nb
    rows = nb * Lp

    # (N, C, L) -> (Nb*Lp, cin0_p), zero padded.  Padding is causally inert:
    # padded time rows / padded batches are never read by valid output rows.
    x = jnp.transpose(x_ncl, (0, 2, 1))
    x = jnp.pad(x, ((0, Nb - N), (0, Lp - L), (0, cin0_p - cin)))
    x2d = x.reshape(Nb * Lp, cin0_p)

    # Causal 0/1 shift matrices (one per distinct non-zero tap shift).
    shifts = sorted({(k - 1 - j) * blk["dilation"]
                     for blk in blocks for j in range(k)} - {0})
    shift_to_idx = {s: i for i, s in enumerate(shifts)}
    r = jnp.arange(rows)
    shift_mats = []
    for s in shifts:
        mat = (r[:, None] - s == r[None, :]) & ((r % Lp) >= s)[:, None]
        shift_mats.append(mat.astype(jnp.bfloat16))

    # Flatten per-block weights; weights and shift matrices use constant
    # index_maps so they are DMA'd into VMEM once and stay resident.
    meta, w_args, w_specs = [], [], []
    for blk in blocks:
        meta.append({"d": blk["dilation"], "down": blk["down_fused"],
                     "cout_p": blk["cout_p"]})
        for name in ("w1", "b1", "w2", "b2"):
            arr = blk[name]
            w_args.append(arr)
            w_specs.append(pl.BlockSpec(arr.shape, _const_index_map(arr.ndim)))
    s_specs = [pl.BlockSpec((rows, rows), _const_index_map(2)) for _ in shifts]

    out = pl.pallas_call(
        _make_tcn_kernel(meta, k, len(shifts), shift_to_idx),
        out_shape=jax.ShapeDtypeStruct((Nb * Lp, cout_p), jnp.float32),
        grid_spec=pltpu.PrefetchScalarGridSpec(
            num_scalar_prefetch=0,
            grid=(n_steps,),
            in_specs=([pl.BlockSpec((rows, cin0_p), lambda i: (i, 0))]
                      + s_specs + w_specs),
            out_specs=pl.BlockSpec((rows, cout_p), lambda i: (i, 0)),
        ),
        compiler_params=pltpu.CompilerParams(
            dimension_semantics=("parallel",),
            vmem_limit_bytes=_vmem_limit_bytes(w_args, shift_mats, rows,
                                               cin0_p, cout_p),
        ),
    )(x2d, *shift_mats, *w_args)

    y = out.reshape(Nb, Lp, cout_p)[:N, :L, :cout]
    return jnp.transpose(y, (0, 2, 1))                    # back to (N, C, L)


# ----------------------------------------------------------------------------
# Parameters (deterministic synthetic init, pre-packed once)
# ----------------------------------------------------------------------------

class KeyGen:
    def __init__(self, seed):
        self.key = jax.random.PRNGKey(seed)

    def __call__(self):
        self.key, k = jax.random.split(self.key)
        return k


def init_tcn_params(num_inputs, num_channels, kernel_size=2, seed=0):
    """Synthetic init matching TemporalBlock.init_weights (N(0, 0.01) weights).
    weight_norm(Conv1d) is a reparameterization w = g * v/||v|| with g = ||v||
    at init, so the effective weight equals v and is sampled directly."""
    kg = KeyGen(seed)

    def sample_conv(ci, co, kk):
        w = 0.01 * jax.random.normal(kg(), (co, ci, kk), jnp.float32)  # torch layout
        b = 0.01 * jax.random.normal(kg(), (co,), jnp.float32)
        return jnp.transpose(w, (2, 1, 0)), b                          # (kk, ci, co)

    blocks = []
    cin = num_inputs
    for lvl, cout in enumerate(num_channels):
        d = 2 ** lvl
        cin_p, cout_p = _round_up(cin, 128), _round_up(cout, 128)
        t1, b1 = sample_conv(cin, cout, kernel_size)
        t2, b2 = sample_conv(cout, cout, kernel_size)
        has_down = cin != cout
        td, bd = sample_conv(cin, cout, 1) if has_down else (None, None)

        # conv1 weight (padded, bf16); if a 1x1 downsample exists it is fused
        # along the output-channel axis (weight only on the current-time tap).
        n1 = 2 * cout_p if has_down else cout_p
        w1 = jnp.zeros((kernel_size, cin_p, n1), jnp.float32)
        w1 = w1.at[:, :cin, :cout].set(t1)
        b1p = jnp.zeros((1, n1), jnp.float32).at[0, :cout].set(b1)
        if has_down:
            w1 = w1.at[kernel_size - 1, :cin, cout_p:cout_p + cout].set(td[0])
            b1p = b1p.at[0, cout_p:cout_p + cout].set(bd)

        w2 = jnp.zeros((kernel_size, cout_p, cout_p), jnp.float32)
        w2 = w2.at[:, :cout, :cout].set(t2)
        b2p = jnp.zeros((1, cout_p), jnp.float32).at[0, :cout].set(b2)

        blocks.append({
            "dilation": d, "cin": cin, "cout": cout,
            "cin_p": cin_p, "cout_p": cout_p, "down_fused": has_down,
            "w1": w1.astype(jnp.bfloat16), "b1": b1p,
            "w2": w2.astype(jnp.bfloat16), "b2": b2p,
            # raw f32 weights kept only for the pure-JAX reference check
            "raw": {"w1": t1, "b1": b1, "w2": t2, "b2": b2, "wd": td, "bd": bd},
        })
        cin = cout
    return {"blocks": blocks, "kernel_size": kernel_size}


# ----------------------------------------------------------------------------
# Pure-JAX f32 reference (eval mode) for a numerical sanity check
# ----------------------------------------------------------------------------

def _ref_causal_conv(x_nlc, taps, b, d):
    k, _, co = taps.shape
    N, L, _ = x_nlc.shape
    out = jnp.zeros((N, L, co), jnp.float32) + b
    for j in range(k):
        s = (k - 1 - j) * d
        xs = x_nlc if s == 0 else jnp.pad(x_nlc, ((0, 0), (s, 0), (0, 0)))[:, :L, :]
        out = out + xs @ taps[j]
    return out


def tcn_reference(params, x_ncl):
    x = jnp.transpose(x_ncl, (0, 2, 1))
    for blk in params["blocks"]:
        d, raw = blk["dilation"], blk["raw"]
        h = jax.nn.relu(_ref_causal_conv(x, raw["w1"], raw["b1"], d))
        out = jax.nn.relu(_ref_causal_conv(h, raw["w2"], raw["b2"], d))
        res = x if raw["wd"] is None else _ref_causal_conv(x, raw["wd"], raw["bd"], 1)
        x = jax.nn.relu(out + res)
    return jnp.transpose(x, (0, 2, 1))


# ----------------------------------------------------------------------------
# Main
# ----------------------------------------------------------------------------

if __name__ == "__main__":
    # num_inputs != num_channels[0] so the fused 1x1 downsample path is
    # exercised; dilations are 1, 2, 4 as in a 3-level TemporalConvNet.
    N, L = 2, 16
    num_inputs = 32
    num_channels = [64, 64, 64]
    kernel_size = 2

    params = init_tcn_params(num_inputs, num_channels, kernel_size, seed=0)
    x = jax.random.normal(jax.random.PRNGKey(0), (N, num_inputs, L), jnp.float32)

    fwd = jax.jit(lambda inp: tcn_forward(params, inp))
    y = fwd(x)
    jax.block_until_ready(y)
    assert y.shape == (N, num_channels[-1], L), y.shape

    # Numerical check vs. pure-JAX f32 reference (kernel uses bf16 matmul
    # inputs with f32 accumulation, hence the loose tolerance).
    y_ref = jax.jit(lambda inp: tcn_reference(params, inp))(x)
    err = float(jnp.max(jnp.abs(y - y_ref)))
    assert err < 1e-2, f"max abs error {err}"

    print("KERNEL_OK")
</pallas_src>

<mosaic_0001>
module attributes {stable_mosaic.version = 11 : i64} {
  func.func @kernel(%arg0: i32, %arg1: memref<32x128xf32, #tpu.memory_space<vmem>>, %arg2: memref<32x32xbf16, #tpu.memory_space<vmem>>, %arg3: memref<32x32xbf16, #tpu.memory_space<vmem>>, %arg4: memref<32x32xbf16, #tpu.memory_space<vmem>>, %arg5: memref<2x128x256xbf16, #tpu.memory_space<vmem>>, %arg6: memref<1x256xf32, #tpu.memory_space<vmem>>, %arg7: memref<2x128x128xbf16, #tpu.memory_space<vmem>>, %arg8: memref<1x128xf32, #tpu.memory_space<vmem>>, %arg9: memref<2x128x128xbf16, #tpu.memory_space<vmem>>, %arg10: memref<1x128xf32, #tpu.memory_space<vmem>>, %arg11: memref<2x128x128xbf16, #tpu.memory_space<vmem>>, %arg12: memref<1x128xf32, #tpu.memory_space<vmem>>, %arg13: memref<2x128x128xbf16, #tpu.memory_space<vmem>>, %arg14: memref<1x128xf32, #tpu.memory_space<vmem>>, %arg15: memref<2x128x128xbf16, #tpu.memory_space<vmem>>, %arg16: memref<1x128xf32, #tpu.memory_space<vmem>>, %arg17: memref<32x128xf32, #tpu.memory_space<vmem>>) attributes {dimension_semantics = [#tpu.dimension_semantics<parallel>], iteration_bounds = array<i64: 1>, scalar_prefetch = 0 : i64, scratch_operands = 0 : i64, tpu.core_type = #tpu.core_type<tc>, window_params = [{transform_indices = @transform_0, window_bounds = array<i64: 32, 128>}, {pipeline_mode = #tpu.pipeline_mode<synchronous>, transform_indices = @transform_1, window_bounds = array<i64: 32, 32>}, {pipeline_mode = #tpu.pipeline_mode<synchronous>, transform_indices = @transform_2, window_bounds = array<i64: 32, 32>}, {pipeline_mode = #tpu.pipeline_mode<synchronous>, transform_indices = @transform_3, window_bounds = array<i64: 32, 32>}, {pipeline_mode = #tpu.pipeline_mode<synchronous>, transform_indices = @transform_4, window_bounds = array<i64: 2, 128, 256>}, {pipeline_mode = #tpu.pipeline_mode<synchronous>, transform_indices = @transform_5, window_bounds = array<i64: 1, 256>}, {pipeline_mode = #tpu.pipeline_mode<synchronous>, transform_indices = @transform_6, window_bounds = array<i64: 2, 128, 128>}, {pipeline_mode = #tpu.pipeline_mode<synchronous>, transform_indices = @transform_7, window_bounds = array<i64: 1, 128>}, {pipeline_mode = #tpu.pipeline_mode<synchronous>, transform_indices = @transform_8, window_bounds = array<i64: 2, 128, 128>}, {pipeline_mode = #tpu.pipeline_mode<synchronous>, transform_indices = @transform_9, window_bounds = array<i64: 1, 128>}, {pipeline_mode = #tpu.pipeline_mode<synchronous>, transform_indices = @transform_10, window_bounds = array<i64: 2, 128, 128>}, {pipeline_mode = #tpu.pipeline_mode<synchronous>, transform_indices = @transform_11, window_bounds = array<i64: 1, 128>}, {pipeline_mode = #tpu.pipeline_mode<synchronous>, transform_indices = @transform_12, window_bounds = array<i64: 2, 128, 128>}, {pipeline_mode = #tpu.pipeline_mode<synchronous>, transform_indices = @transform_13, window_bounds = array<i64: 1, 128>}, {pipeline_mode = #tpu.pipeline_mode<synchronous>, transform_indices = @transform_14, window_bounds = array<i64: 2, 128, 128>}, {pipeline_mode = #tpu.pipeline_mode<synchronous>, transform_indices = @transform_15, window_bounds = array<i64: 1, 128>}, {transform_indices = @transform_16, window_bounds = array<i64: 32, 128>}]} {
    %c0 = arith.constant 0 : index
    %c0_0 = arith.constant 0 : index
    %0 = vector.load %arg1[%c0, %c0_0] : memref<32x128xf32, #tpu.memory_space<vmem>>, vector<32x128xf32>
    %1 = arith.truncf %0 : vector<32x128xf32> to vector<32x128xbf16>
    %c0_1 = arith.constant 0 : index
    %c0_2 = arith.constant 0 : index
    %2 = vector.load %arg2[%c0_1, %c0_2] : memref<32x32xbf16, #tpu.memory_space<vmem>>, vector<32x32xbf16>
    %cst = arith.constant dense<0.000000e+00> : vector<32x128xf32>
    %3 = tpu.matmul %2, %1, %cst {dimension_numbers = #tpu.dot_dimension_numbers<[1], [0], [0], [1], [0, 0, 1, 1], [], []>} : vector<32x32xbf16>, vector<32x128xbf16>, vector<32x128xf32> -> vector<32x128xf32>
    %4 = arith.truncf %3 : vector<32x128xf32> to vector<32x128xbf16>
    %c0_3 = arith.constant 0 : index
    %c0_4 = arith.constant 0 : index
    %c0_5 = arith.constant 0 : index
    %5 = vector.load %arg5[%c0_3, %c0_4, %c0_5] : memref<2x128x256xbf16, #tpu.memory_space<vmem>>, vector<1x128x256xbf16>
    %6 = vector.shape_cast %5 : vector<1x128x256xbf16> to vector<128x256xbf16>
    %cst_6 = arith.constant dense<0.000000e+00> : vector<32x256xf32>
    %7 = tpu.matmul %4, %6, %cst_6 {dimension_numbers = #tpu.dot_dimension_numbers<[1], [0], [0], [1], [0, 0, 1, 1], [], []>} : vector<32x128xbf16>, vector<128x256xbf16>, vector<32x256xf32> -> vector<32x256xf32>
    %c1 = arith.constant 1 : index
    %c0_7 = arith.constant 0 : index
    %c0_8 = arith.constant 0 : index
    %8 = vector.load %arg5[%c1, %c0_7, %c0_8] : memref<2x128x256xbf16, #tpu.memory_space<vmem>>, vector<1x128x256xbf16>
    %9 = vector.shape_cast %8 : vector<1x128x256xbf16> to vector<128x256xbf16>
    %cst_9 = arith.constant dense<0.000000e+00> : vector<32x256xf32>
    %10 = tpu.matmul %1, %9, %cst_9 {dimension_numbers = #tpu.dot_dimension_numbers<[1], [0], [0], [1], [0, 0, 1, 1], [], []>} : vector<32x128xbf16>, vector<128x256xbf16>, vector<32x256xf32> -> vector<32x256xf32>
    %11 = arith.addf %7, %10 : vector<32x256xf32>
    %c0_10 = arith.constant 0 : index
    %c0_11 = arith.constant 0 : index
    %12 = vector.load %arg6[%c0_10, %c0_11] : memref<1x256xf32, #tpu.memory_space<vmem>>, vector<1x256xf32>
    %13 = vector.broadcast %12 : vector<1x256xf32> to vector<32x256xf32>
    %14 = arith.addf %11, %13 : vector<32x256xf32>
    %15 = vector.extract_strided_slice %14 {offsets = [0, 0], sizes = [32, 128], strides = [1, 1]} : vector<32x256xf32> to vector<32x128xf32>
    %16 = vector.extract_strided_slice %14 {offsets = [0, 128], sizes = [32, 128], strides = [1, 1]} : vector<32x256xf32> to vector<32x128xf32>
    %cst_12 = arith.constant 0.000000e+00 : f32
    %17 = vector.broadcast %cst_12 : f32 to vector<32x128xf32>
    %18 = arith.maximumf %15, %17 : vector<32x128xf32>
    %19 = arith.truncf %18 : vector<32x128xf32> to vector<32x128xbf16>
    %c0_13 = arith.constant 0 : index
    %c0_14 = arith.constant 0 : index
    %20 = vector.load %arg2[%c0_13, %c0_14] : memref<32x32xbf16, #tpu.memory_space<vmem>>, vector<32x32xbf16>
    %cst_15 = arith.constant dense<0.000000e+00> : vector<32x128xf32>
    %21 = tpu.matmul %20, %19, %cst_15 {dimension_numbers = #tpu.dot_dimension_numbers<[1], [0], [0], [1], [0, 0, 1, 1], [], []>} : vector<32x32xbf16>, vector<32x128xbf16>, vector<32x128xf32> -> vector<32x128xf32>
    %22 = arith.truncf %21 : vector<32x128xf32> to vector<32x128xbf16>
    %c0_16 = arith.constant 0 : index
    %c0_17 = arith.constant 0 : index
    %c0_18 = arith.constant 0 : index
    %23 = vector.load %arg7[%c0_16, %c0_17, %c0_18] : memref<2x128x128xbf16, #tpu.memory_space<vmem>>, vector<1x128x128xbf16>
    %24 = vector.shape_cast %23 : vector<1x128x128xbf16> to vector<128x128xbf16>
    %cst_19 = arith.constant dense<0.000000e+00> : vector<32x128xf32>
    %25 = tpu.matmul %22, %24, %cst_19 {dimension_numbers = #tpu.dot_dimension_numbers<[1], [0], [0], [1], [0, 0, 1, 1], [], []>} : vector<32x128xbf16>, vector<128x128xbf16>, vector<32x128xf32> -> vector<32x128xf32>
    %c1_20 = arith.constant 1 : index
    %c0_21 = arith.constant 0 : index
    %c0_22 = arith.constant 0 : index
    %26 = vector.load %arg7[%c1_20, %c0_21, %c0_22] : memref<2x128x128xbf16, #tpu.memory_space<vmem>>, vector<1x128x128xbf16>
    %27 = vector.shape_cast %26 : vector<1x128x128xbf16> to vector<128x128xbf16>
    %cst_23 = arith.constant dense<0.000000e+00> : vector<32x128xf32>
    %28 = tpu.matmul %19, %27, %cst_23 {dimension_numbers = #tpu.dot_dimension_numbers<[1], [0], [0], [1], [0, 0, 1, 1], [], []>} : vector<32x128xbf16>, vector<128x128xbf16>, vector<32x128xf32> -> vector<32x128xf32>
    %29 = arith.addf %25, %28 : vector<32x128xf32>
    %c0_24 = arith.constant 0 : index
    %c0_25 = arith.constant 0 : index
    %30 = vector.load %arg8[%c0_24, %c0_25] : memref<1x128xf32, #tpu.memory_space<vmem>>, vector<1x128xf32>
    %31 = vector.broadcast %30 : vector<1x128xf32> to vector<32x128xf32>
    %32 = arith.addf %29, %31 : vector<32x128xf32>
    %cst_26 = arith.constant 0.000000e+00 : f32
    %33 = vector.broadcast %cst_26 : f32 to vector<32x128xf32>
    %34 = arith.maximumf %32, %33 : vector<32x128xf32>
    %35 = arith.addf %34, %16 : vector<32x128xf32>
    %cst_27 = arith.constant 0.000000e+00 : f32
    %36 = vector.broadcast %cst_27 : f32 to vector<32x128xf32>
    %37 = arith.maximumf %35, %36 : vector<32x128xf32>
    %38 = arith.truncf %37 : vector<32x128xf32> to vector<32x128xbf16>
    %c0_28 = arith.constant 0 : index
    %c0_29 = arith.constant 0 : index
    %39 = vector.load %arg3[%c0_28, %c0_29] : memref<32x32xbf16, #tpu.memory_space<vmem>>, vector<32x32xbf16>
    %cst_30 = arith.constant dense<0.000000e+00> : vector<32x128xf32>
    %40 = tpu.matmul %39, %38, %cst_30 {dimension_numbers = #tpu.dot_dimension_numbers<[1], [0], [0], [1], [0, 0, 1, 1], [], []>} : vector<32x32xbf16>, vector<32x128xbf16>, vector<32x128xf32> -> vector<32x128xf32>
    %41 = arith.truncf %40 : vector<32x128xf32> to vector<32x128xbf16>
    %c0_31 = arith.constant 0 : index
    %c0_32 = arith.constant 0 : index
    %c0_33 = arith.constant 0 : index
    %42 = vector.load %arg9[%c0_31, %c0_32, %c0_33] : memref<2x128x128xbf16, #tpu.memory_space<vmem>>, vector<1x128x128xbf16>
    %43 = vector.shape_cast %42 : vector<1x128x128xbf16> to vector<128x128xbf16>
    %cst_34 = arith.constant dense<0.000000e+00> : vector<32x128xf32>
    %44 = tpu.matmul %41, %43, %cst_34 {dimension_numbers = #tpu.dot_dimension_numbers<[1], [0], [0], [1], [0, 0, 1, 1], [], []>} : vector<32x128xbf16>, vector<128x128xbf16>, vector<32x128xf32> -> vector<32x128xf32>
    %c1_35 = arith.constant 1 : index
    %c0_36 = arith.constant 0 : index
    %c0_37 = arith.constant 0 : index
    %45 = vector.load %arg9[%c1_35, %c0_36, %c0_37] : memref<2x128x128xbf16, #tpu.memory_space<vmem>>, vector<1x128x128xbf16>
    %46 = vector.shape_cast %45 : vector<1x128x128xbf16> to vector<128x128xbf16>
    %cst_38 = arith.constant dense<0.000000e+00> : vector<32x128xf32>
    %47 = tpu.matmul %38, %46, %cst_38 {dimension_numbers = #tpu.dot_dimension_numbers<[1], [0], [0], [1], [0, 0, 1, 1], [], []>} : vector<32x128xbf16>, vector<128x128xbf16>, vector<32x128xf32> -> vector<32x128xf32>
    %48 = arith.addf %44, %47 : vector<32x128xf32>
    %c0_39 = arith.constant 0 : index
    %c0_40 = arith.constant 0 : index
    %49 = vector.load %arg10[%c0_39, %c0_40] : memref<1x128xf32, #tpu.memory_space<vmem>>, vector<1x128xf32>
    %50 = vector.broadcast %49 : vector<1x128xf32> to vector<32x128xf32>
    %51 = arith.addf %48, %50 : vector<32x128xf32>
    %cst_41 = arith.constant 0.000000e+00 : f32
    %52 = vector.broadcast %cst_41 : f32 to vector<32x128xf32>
    %53 = arith.maximumf %51, %52 : vector<32x128xf32>
    %54 = arith.truncf %53 : vector<32x128xf32> to vector<32x128xbf16>
    %c0_42 = arith.constant 0 : index
    %c0_43 = arith.constant 0 : index
    %55 = vector.load %arg3[%c0_42, %c0_43] : memref<32x32xbf16, #tpu.memory_space<vmem>>, vector<32x32xbf16>
    %cst_44 = arith.constant dense<0.000000e+00> : vector<32x128xf32>
    %56 = tpu.matmul %55, %54, %cst_44 {dimension_numbers = #tpu.dot_dimension_numbers<[1], [0], [0], [1], [0, 0, 1, 1], [], []>} : vector<32x32xbf16>, vector<32x128xbf16>, vector<32x128xf32> -> vector<32x128xf32>
    %57 = arith.truncf %56 : vector<32x128xf32> to vector<32x128xbf16>
    %c0_45 = arith.constant 0 : index
    %c0_46 = arith.constant 0 : index
    %c0_47 = arith.constant 0 : index
    %58 = vector.load %arg11[%c0_45, %c0_46, %c0_47] : memref<2x128x128xbf16, #tpu.memory_space<vmem>>, vector<1x128x128xbf16>
    %59 = vector.shape_cast %58 : vector<1x128x128xbf16> to vector<128x128xbf16>
    %cst_48 = arith.constant dense<0.000000e+00> : vector<32x128xf32>
    %60 = tpu.matmul %57, %59, %cst_48 {dimension_numbers = #tpu.dot_dimension_numbers<[1], [0], [0], [1], [0, 0, 1, 1], [], []>} : vector<32x128xbf16>, vector<128x128xbf16>, vector<32x128xf32> -> vector<32x128xf32>
    %c1_49 = arith.constant 1 : index
    %c0_50 = arith.constant 0 : index
    %c0_51 = arith.constant 0 : index
    %61 = vector.load %arg11[%c1_49, %c0_50, %c0_51] : memref<2x128x128xbf16, #tpu.memory_space<vmem>>, vector<1x128x128xbf16>
    %62 = vector.shape_cast %61 : vector<1x128x128xbf16> to vector<128x128xbf16>
    %cst_52 = arith.constant dense<0.000000e+00> : vector<32x128xf32>
    %63 = tpu.matmul %54, %62, %cst_52 {dimension_numbers = #tpu.dot_dimension_numbers<[1], [0], [0], [1], [0, 0, 1, 1], [], []>} : vector<32x128xbf16>, vector<128x128xbf16>, vector<32x128xf32> -> vector<32x128xf32>
    %64 = arith.addf %60, %63 : vector<32x128xf32>
    %c0_53 = arith.constant 0 : index
    %c0_54 = arith.constant 0 : index
    %65 = vector.load %arg12[%c0_53, %c0_54] : memref<1x128xf32, #tpu.memory_space<vmem>>, vector<1x128xf32>
    %66 = vector.broadcast %65 : vector<1x128xf32> to vector<32x128xf32>
    %67 = arith.addf %64, %66 : vector<32x128xf32>
    %cst_55 = arith.constant 0.000000e+00 : f32
    %68 = vector.broadcast %cst_55 : f32 to vector<32x128xf32>
    %69 = arith.maximumf %67, %68 : vector<32x128xf32>
    %70 = arith.addf %69, %37 : vector<32x128xf32>
    %cst_56 = arith.constant 0.000000e+00 : f32
    %71 = vector.broadcast %cst_56 : f32 to vector<32x128xf32>
    %72 = arith.maximumf %70, %71 : vector<32x128xf32>
    %73 = arith.truncf %72 : vector<32x128xf32> to vector<32x128xbf16>
    %c0_57 = arith.constant 0 : index
    %c0_58 = arith.constant 0 : index
    %74 = vector.load %arg4[%c0_57, %c0_58] : memref<32x32xbf16, #tpu.memory_space<vmem>>, vector<32x32xbf16>
    %cst_59 = arith.constant dense<0.000000e+00> : vector<32x128xf32>
    %75 = tpu.matmul %74, %73, %cst_59 {dimension_numbers = #tpu.dot_dimension_numbers<[1], [0], [0], [1], [0, 0, 1, 1], [], []>} : vector<32x32xbf16>, vector<32x128xbf16>, vector<32x128xf32> -> vector<32x128xf32>
    %76 = arith.truncf %75 : vector<32x128xf32> to vector<32x128xbf16>
    %c0_60 = arith.constant 0 : index
    %c0_61 = arith.constant 0 : index
    %c0_62 = arith.constant 0 : index
    %77 = vector.load %arg13[%c0_60, %c0_61, %c0_62] : memref<2x128x128xbf16, #tpu.memory_space<vmem>>, vector<1x128x128xbf16>
    %78 = vector.shape_cast %77 : vector<1x128x128xbf16> to vector<128x128xbf16>
    %cst_63 = arith.constant dense<0.000000e+00> : vector<32x128xf32>
    %79 = tpu.matmul %76, %78, %cst_63 {dimension_numbers = #tpu.dot_dimension_numbers<[1], [0], [0], [1], [0, 0, 1, 1], [], []>} : vector<32x128xbf16>, vector<128x128xbf16>, vector<32x128xf32> -> vector<32x128xf32>
    %c1_64 = arith.constant 1 : index
    %c0_65 = arith.constant 0 : index
    %c0_66 = arith.constant 0 : index
    %80 = vector.load %arg13[%c1_64, %c0_65, %c0_66] : memref<2x128x128xbf16, #tpu.memory_space<vmem>>, vector<1x128x128xbf16>
    %81 = vector.shape_cast %80 : vector<1x128x128xbf16> to vector<128x128xbf16>
    %cst_67 = arith.constant dense<0.000000e+00> : vector<32x128xf32>
    %82 = tpu.matmul %73, %81, %cst_67 {dimension_numbers = #tpu.dot_dimension_numbers<[1], [0], [0], [1], [0, 0, 1, 1], [], []>} : vector<32x128xbf16>, vector<128x128xbf16>, vector<32x128xf32> -> vector<32x128xf32>
    %83 = arith.addf %79, %82 : vector<32x128xf32>
    %c0_68 = arith.constant 0 : index
    %c0_69 = arith.constant 0 : index
    %84 = vector.load %arg14[%c0_68, %c0_69] : memref<1x128xf32, #tpu.memory_space<vmem>>, vector<1x128xf32>
    %85 = vector.broadcast %84 : vector<1x128xf32> to vector<32x128xf32>
    %86 = arith.addf %83, %85 : vector<32x128xf32>
    %cst_70 = arith.constant 0.000000e+00 : f32
    %87 = vector.broadcast %cst_70 : f32 to vector<32x128xf32>
    %88 = arith.maximumf %86, %87 : vector<32x128xf32>
    %89 = arith.truncf %88 : vector<32x128xf32> to vector<32x128xbf16>
    %c0_71 = arith.constant 0 : index
    %c0_72 = arith.constant 0 : index
    %90 = vector.load %arg4[%c0_71, %c0_72] : memref<32x32xbf16, #tpu.memory_space<vmem>>, vector<32x32xbf16>
    %cst_73 = arith.constant dense<0.000000e+00> : vector<32x128xf32>
    %91 = tpu.matmul %90, %89, %cst_73 {dimension_numbers = #tpu.dot_dimension_numbers<[1], [0], [0], [1], [0, 0, 1, 1], [], []>} : vector<32x32xbf16>, vector<32x128xbf16>, vector<32x128xf32> -> vector<32x128xf32>
    %92 = arith.truncf %91 : vector<32x128xf32> to vector<32x128xbf16>
    %c0_74 = arith.constant 0 : index
    %c0_75 = arith.constant 0 : index
    %c0_76 = arith.constant 0 : index
    %93 = vector.load %arg15[%c0_74, %c0_75, %c0_76] : memref<2x128x128xbf16, #tpu.memory_space<vmem>>, vector<1x128x128xbf16>
    %94 = vector.shape_cast %93 : vector<1x128x128xbf16> to vector<128x128xbf16>
    %cst_77 = arith.constant dense<0.000000e+00> : vector<32x128xf32>
    %95 = tpu.matmul %92, %94, %cst_77 {dimension_numbers = #tpu.dot_dimension_numbers<[1], [0], [0], [1], [0, 0, 1, 1], [], []>} : vector<32x128xbf16>, vector<128x128xbf16>, vector<32x128xf32> -> vector<32x128xf32>
    %c1_78 = arith.constant 1 : index
    %c0_79 = arith.constant 0 : index
    %c0_80 = arith.constant 0 : index
    %96 = vector.load %arg15[%c1_78, %c0_79, %c0_80] : memref<2x128x128xbf16, #tpu.memory_space<vmem>>, vector<1x128x128xbf16>
    %97 = vector.shape_cast %96 : vector<1x128x128xbf16> to vector<128x128xbf16>
    %cst_81 = arith.constant dense<0.000000e+00> : vector<32x128xf32>
    %98 = tpu.matmul %89, %97, %cst_81 {dimension_numbers = #tpu.dot_dimension_numbers<[1], [0], [0], [1], [0, 0, 1, 1], [], []>} : vector<32x128xbf16>, vector<128x128xbf16>, vector<32x128xf32> -> vector<32x128xf32>
    %99 = arith.addf %95, %98 : vector<32x128xf32>
    %c0_82 = arith.constant 0 : index
    %c0_83 = arith.constant 0 : index
    %100 = vector.load %arg16[%c0_82, %c0_83] : memref<1x128xf32, #tpu.memory_space<vmem>>, vector<1x128xf32>
    %101 = vector.broadcast %100 : vector<1x128xf32> to vector<32x128xf32>
    %102 = arith.addf %99, %101 : vector<32x128xf32>
    %cst_84 = arith.constant 0.000000e+00 : f32
    %103 = vector.broadcast %cst_84 : f32 to vector<32x128xf32>
    %104 = arith.maximumf %102, %103 : vector<32x128xf32>
    %105 = arith.addf %104, %72 : vector<32x128xf32>
    %cst_85 = arith.constant 0.000000e+00 : f32
    %106 = vector.broadcast %cst_85 : f32 to vector<32x128xf32>
    %107 = arith.maximumf %105, %106 : vector<32x128xf32>
    %c0_86 = arith.constant 0 : index
    %c0_87 = arith.constant 0 : index
    %108 = vector.load %arg17[%c0_86, %c0_87] : memref<32x128xf32, #tpu.memory_space<vmem>>, vector<32x128xf32>
    tpu.vector_store %arg17[%c0_86, %c0_87], %107 {strides = array<i32>} : memref<32x128xf32, #tpu.memory_space<vmem>>, vector<32x128xf32>,
    return
  }
  func.func @transform_0(%arg0: i32) -> (i32, i32) {
    %c0_i32 = arith.constant 0 : i32
    %c0_i32_0 = arith.constant 0 : i32
    return %arg0, %c0_i32 : i32, i32
  }
  func.func @transform_1(%arg0: i32) -> (i32, i32) {
    %c0_i32 = arith.constant 0 : i32
    %c0_i32_0 = arith.constant 0 : i32
    %c0_i32_1 = arith.constant 0 : i32
    return %c0_i32, %c0_i32_0 : i32, i32
  }
  func.func @transform_2(%arg0: i32) -> (i32, i32) {
    %c0_i32 = arith.constant 0 : i32
    %c0_i32_0 = arith.constant 0 : i32
    %c0_i32_1 = arith.constant 0 : i32
    return %c0_i32, %c0_i32_0 : i32, i32
  }
  func.func @transform_3(%arg0: i32) -> (i32, i32) {
    %c0_i32 = arith.constant 0 : i32
    %c0_i32_0 = arith.constant 0 : i32
    %c0_i32_1 = arith.constant 0 : i32
    return %c0_i32, %c0_i32_0 : i32, i32
  }
  func.func @transform_4(%arg0: i32) -> (i32, i32, i32) {
    %c0_i32 = arith.constant 0 : i32
    %c0_i32_0 = arith.constant 0 : i32
    %c0_i32_1 = arith.constant 0 : i32
    %c0_i32_2 = arith.constant 0 : i32
    return %c0_i32, %c0_i32_0, %c0_i32_1 : i32, i32, i32
  }
  func.func @transform_5(%arg0: i32) -> (i32, i32) {
    %c0_i32 = arith.constant 0 : i32
    %c0_i32_0 = arith.constant 0 : i32
    %c0_i32_1 = arith.constant 0 : i32
    return %c0_i32, %c0_i32_0 : i32, i32
  }
  func.func @transform_6(%arg0: i32) -> (i32, i32, i32) {
    %c0_i32 = arith.constant 0 : i32
    %c0_i32_0 = arith.constant 0 : i32
    %c0_i32_1 = arith.constant 0 : i32
    %c0_i32_2 = arith.constant 0 : i32
    return %c0_i32, %c0_i32_0, %c0_i32_1 : i32, i32, i32
  }
  func.func @transform_7(%arg0: i32) -> (i32, i32) {
    %c0_i32 = arith.constant 0 : i32
    %c0_i32_0 = arith.constant 0 : i32
    %c0_i32_1 = arith.constant 0 : i32
    return %c0_i32, %c0_i32_0 : i32, i32
  }
  func.func @transform_8(%arg0: i32) -> (i32, i32, i32) {
    %c0_i32 = arith.constant 0 : i32
    %c0_i32_0 = arith.constant 0 : i32
    %c0_i32_1 = arith.constant 0 : i32
    %c0_i32_2 = arith.constant 0 : i32
    return %c0_i32, %c0_i32_0, %c0_i32_1 : i32, i32, i32
  }
  func.func @transform_9(%arg0: i32) -> (i32, i32) {
    %c0_i32 = arith.constant 0 : i32
    %c0_i32_0 = arith.constant 0 : i32
    %c0_i32_1 = arith.constant 0 : i32
    return %c0_i32, %c0_i32_0 : i32, i32
  }
  func.func @transform_10(%arg0: i32) -> (i32, i32, i32) {
    %c0_i32 = arith.constant 0 : i32
    %c0_i32_0 = arith.constant 0 : i32
    %c0_i32_1 = arith.constant 0 : i32
    %c0_i32_2 = arith.constant 0 : i32
    return %c0_i32, %c0_i32_0, %c0_i32_1 : i32, i32, i32
  }
  func.func @transform_11(%arg0: i32) -> (i32, i32) {
    %c0_i32 = arith.constant 0 : i32
    %c0_i32_0 = arith.constant 0 : i32
    %c0_i32_1 = arith.constant 0 : i32
    return %c0_i32, %c0_i32_0 : i32, i32
  }
  func.func @transform_12(%arg0: i32) -> (i32, i32, i32) {
    %c0_i32 = arith.constant 0 : i32
    %c0_i32_0 = arith.constant 0 : i32
    %c0_i32_1 = arith.constant 0 : i32
    %c0_i32_2 = arith.constant 0 : i32
    return %c0_i32, %c0_i32_0, %c0_i32_1 : i32, i32, i32
  }
  func.func @transform_13(%arg0: i32) -> (i32, i32) {
    %c0_i32 = arith.constant 0 : i32
    %c0_i32_0 = arith.constant 0 : i32
    %c0_i32_1 = arith.constant 0 : i32
    return %c0_i32, %c0_i32_0 : i32, i32
  }
  func.func @transform_14(%arg0: i32) -> (i32, i32, i32) {
    %c0_i32 = arith.constant 0 : i32
    %c0_i32_0 = arith.constant 0 : i32
    %c0_i32_1 = arith.constant 0 : i32
    %c0_i32_2 = arith.constant 0 : i32
    return %c0_i32, %c0_i32_0, %c0_i32_1 : i32, i32, i32
  }
  func.func @transform_15(%arg0: i32) -> (i32, i32) {
    %c0_i32 = arith.constant 0 : i32
    %c0_i32_0 = arith.constant 0 : i32
    %c0_i32_1 = arith.constant 0 : i32
    return %c0_i32, %c0_i32_0 : i32, i32
  }
  func.func @transform_16(%arg0: i32) -> (i32, i32) {
    %c0_i32 = arith.constant 0 : i32
    %c0_i32_0 = arith.constant 0 : i32
    return %arg0, %c0_i32 : i32, i32
  }
}

</mosaic_0001>

<llo_original>
// kernel: _lambda_.1
$region0: #{_lambda_.1}
  #allocation0 [shape = 'u32[]', space=smem, size = 0x4, offset = 0x4, fixed_abs, tag = 'smem constant byte address 0x4 - core index']
  #allocation1 [shape = 'u32[144,128]{1,0:T(1,128)}', space=vmem, size = 0x12000, scoped, tag = 'internal scratch']
  %s0 = inlined_call_operand.vmem [shape: f32[32,128], index: 0, kind: input, shape index: {}]
  %s1 = inlined_call_operand.vmem [shape: bf16[32,32], index: 1, kind: input, shape index: {}]
  %s2 = inlined_call_operand.vmem [shape: bf16[32,32], index: 2, kind: input, shape index: {}]
  %s3 = inlined_call_operand.vmem [shape: bf16[32,32], index: 3, kind: input, shape index: {}]
  %s4 = inlined_call_operand.vmem [shape: bf16[2,128,256], index: 4, kind: input, shape index: {}]
  %s5 = inlined_call_operand.vmem [shape: f32[1,256], index: 5, kind: input, shape index: {}]
  %s6 = inlined_call_operand.vmem [shape: bf16[2,128,128], index: 6, kind: input, shape index: {}]
  %s7 = inlined_call_operand.vmem [shape: f32[1,128], index: 7, kind: input, shape index: {}]
  %s8 = inlined_call_operand.vmem [shape: bf16[2,128,128], index: 8, kind: input, shape index: {}]
  %s9 = inlined_call_operand.vmem [shape: f32[1,128], index: 9, kind: input, shape index: {}]
  %s10 = inlined_call_operand.vmem [shape: bf16[2,128,128], index: 10, kind: input, shape index: {}]
  %s11 = inlined_call_operand.vmem [shape: f32[1,128], index: 11, kind: input, shape index: {}]
  %s12 = inlined_call_operand.vmem [shape: bf16[2,128,128], index: 12, kind: input, shape index: {}]
  %s13 = inlined_call_operand.vmem [shape: f32[1,128], index: 13, kind: input, shape index: {}]
  %s14 = inlined_call_operand.vmem [shape: bf16[2,128,128], index: 14, kind: input, shape index: {}]
  %s15 = inlined_call_operand.vmem [shape: f32[1,128], index: 15, kind: input, shape index: {}]
  %s16 = inlined_call_operand.vmem [shape: f32[32,128], index: 16, kind: output, shape index: {}]
  %s17 = sld [smem:[#allocation0]]
  $region74: #{_lambda_.1} parent=0
    _
  %s19 = ssub.s32 1, %s17
  %s20 = scalar_select 0, %s19, %s17
  // Predicated region
  $region2: #{_lambda_.1} parent=0 // pred_check
    _
  $region3: #{_lambda_.1} parent=0 // pred_check_branch
    %22 = sbr.rel (0) target = $region5
  $region4: #{_lambda_.1} parent=0 // pred_region
    _
  $region5: #{_lambda_.1} parent=0 // pred_fallthru
    _
  // Predicated region
  $region6: #{_lambda_.1} parent=0 // pred_check
    _
  $region7: #{_lambda_.1} parent=0 // pred_check_branch
    %24 = sbr.rel (0) target = $region9
  $region8: #{_lambda_.1} parent=0 // pred_region
    _
  $region9: #{_lambda_.1} parent=0 // pred_fallthru
    _
  // Predicated region
  $region10: #{_lambda_.1} parent=0 // pred_check
    _
  $region11: #{_lambda_.1} parent=0 // pred_check_branch
    %26 = sbr.rel (0) target = $region13
  $region12: #{_lambda_.1} parent=0 // pred_region
    _
  $region13: #{_lambda_.1} parent=0 // pred_fallthru
    _
  // Predicated region
  $region14: #{_lambda_.1} parent=0 // pred_check
    _
  $region15: #{_lambda_.1} parent=0 // pred_check_branch
    %28 = sbr.rel (0) target = $region17
  $region16: #{_lambda_.1} parent=0 // pred_region
    _
  $region17: #{_lambda_.1} parent=0 // pred_fallthru
    _
  // Predicated region
  $region18: #{_lambda_.1} parent=0 // pred_check
    _
  $region19: #{_lambda_.1} parent=0 // pred_check_branch
    %30 = sbr.rel (0) target = $region21
  $region20: #{_lambda_.1} parent=0 // pred_region
    _
  $region21: #{_lambda_.1} parent=0 // pred_fallthru
    _
  // Predicated region
  $region22: #{_lambda_.1} parent=0 // pred_check
    _
  $region23: #{_lambda_.1} parent=0 // pred_check_branch
    %32 = sbr.rel (0) target = $region25
  $region24: #{_lambda_.1} parent=0 // pred_region
    _
  $region25: #{_lambda_.1} parent=0 // pred_fallthru
    _
  // Predicated region
  $region26: #{_lambda_.1} parent=0 // pred_check
    _
  $region27: #{_lambda_.1} parent=0 // pred_check_branch
    %34 = sbr.rel (0) target = $region29
  $region28: #{_lambda_.1} parent=0 // pred_region
    _
  $region29: #{_lambda_.1} parent=0 // pred_fallthru
    _
  // Predicated region
  $region30: #{_lambda_.1} parent=0 // pred_check
    _
  $region31: #{_lambda_.1} parent=0 // pred_check_branch
    %36 = sbr.rel (0) target = $region33
  $region32: #{_lambda_.1} parent=0 // pred_region
    _
  $region33: #{_lambda_.1} parent=0 // pred_fallthru
    _
  // Predicated region
  $region34: #{_lambda_.1} parent=0 // pred_check
    _
  $region35: #{_lambda_.1} parent=0 // pred_check_branch
    %38 = sbr.rel (0) target = $region37
  $region36: #{_lambda_.1} parent=0 // pred_region
    _
  $region37: #{_lambda_.1} parent=0 // pred_fallthru
    _
  // Predicated region
  $region38: #{_lambda_.1} parent=0 // pred_check
    _
  $region39: #{_lambda_.1} parent=0 // pred_check_branch
    %40 = sbr.rel (0) target = $region41
  $region40: #{_lambda_.1} parent=0 // pred_region
    _
  $region41: #{_lambda_.1} parent=0 // pred_fallthru
    _
  // Predicated region
  $region42: #{_lambda_.1} parent=0 // pred_check
    _
  $region43: #{_lambda_.1} parent=0 // pred_check_branch
    %42 = sbr.rel (0) target = $region45
  $region44: #{_lambda_.1} parent=0 // pred_region
    _
  $region45: #{_lambda_.1} parent=0 // pred_fallthru
    _
  // Predicated region
  $region46: #{_lambda_.1} parent=0 // pred_check
    _
  $region47: #{_lambda_.1} parent=0 // pred_check_branch
    %44 = sbr.rel (0) target = $region49
  $region48: #{_lambda_.1} parent=0 // pred_region
    _
  $region49: #{_lambda_.1} parent=0 // pred_fallthru
    _
  // Predicated region
  $region50: #{_lambda_.1} parent=0 // pred_check
    _
  $region51: #{_lambda_.1} parent=0 // pred_check_branch
    %46 = sbr.rel (0) target = $region53
  $region52: #{_lambda_.1} parent=0 // pred_region
    _
  $region53: #{_lambda_.1} parent=0 // pred_fallthru
    _
  // Predicated region
  $region54: #{_lambda_.1} parent=0 // pred_check
    _
  $region55: #{_lambda_.1} parent=0 // pred_check_branch
    %48 = sbr.rel (0) target = $region57
  $region56: #{_lambda_.1} parent=0 // pred_region
    _
  $region57: #{_lambda_.1} parent=0 // pred_fallthru
    _
  // Predicated region
  $region58: #{_lambda_.1} parent=0 // pred_check
    _
  $region59: #{_lambda_.1} parent=0 // pred_check_branch
    %50 = sbr.rel (0) target = $region61
  $region60: #{_lambda_.1} parent=0 // pred_region
    _
  $region61: #{_lambda_.1} parent=0 // pred_fallthru
    _
  // Predicated region
  $region62: #{_lambda_.1} parent=0 // pred_check
    _
  $region63: #{_lambda_.1} parent=0 // pred_check_branch
    %52 = sbr.rel (0) target = $region65
  $region64: #{_lambda_.1} parent=0 // pred_region
    _
  $region65: #{_lambda_.1} parent=0 // pred_fallthru
    _
  %v54 = vld [vmem:[%s0] sm:$0xff]
  %v55 = vld [vmem:[%s0 + $0x8] sm:$0xff]
  %v56 = vld [vmem:[%s0 + $0x10] sm:$0xff]
  %v57 = vld [vmem:[%s0 + $0x18] sm:$0xff]
  %v58 = vpack.c.bf16 %v55, %v54
  %v59 = vpack.c.bf16 %v57, %v56
  %v60 = vld [vmem:[%s1] sm:$0xf]
  %v61 = vld [vmem:[%s1 + $0x4] sm:$0xf]
  %v62 = vld [vmem:[%s1 + $0x8] sm:$0xf]
  %v63 = vld [vmem:[%s1 + $0xc] sm:$0xf]
  %v68 = vunpack.c.l.b16 %v60
  %v69 = vunpack.c.l.b16 %v61
  %v70 = vunpack.c.l.b16 %v62
  %v71 = vunpack.c.l.b16 %v63
  %v72 = vpack.c.b16 %v69, %v68
  %v73 = vpack.c.b16 %v71, %v70
  %vm74 = vcmask 261120
  %v76 = vsel %vm74, %v72, 0
  %v79 = vsel %vm74, %v73, 0
  %81 = vmatprep.subr.bf16.mxu0 0
  %82 = vmatpush1.bf16.msra.mxu0 %v58
  %83 = vmatprep.subr.bf16.mxu0 0
  %84 = vmatpush1.bf16.msra.mxu0 %v59
  %85 = vmatprep.subr.bf16.mxu0 0
  %86 = vmatpush1.bf16.msra.mxu0 0
  %87 = vmatprep.subr.bf16.mxu0 0
  %88 = vmatpush1.bf16.msra.mxu0 0
  %89 = vmatprep.subr.bf16.mxu0 0
  %90 = vmatpush1.bf16.msra.mxu0 0
  %91 = vmatprep.subr.bf16.mxu0 0
  %92 = vmatpush1.bf16.msra.mxu0 0
  %93 = vmatprep.subr.bf16.mxu0 0
  %94 = vmatpush1.bf16.msra.mxu0 0
  %95 = vmatprep.subr.bf16.mxu0 0
  %96 = vmatpush1.bf16.msra.mxu0 0
  %97 = vmatprep.subr.bf16.mxu0 0
  %98 = vmatpush1.bf16.msra.mxu0 0
  %99 = vmatprep.subr.bf16.mxu0 0
  %100 = vmatpush1.bf16.msra.mxu0 0
  %101 = vmatprep.subr.bf16.mxu0 0
  %102 = vmatpush1.bf16.msra.mxu0 0
  %103 = vmatprep.subr.bf16.mxu0 0
  %104 = vmatpush1.bf16.msra.mxu0 0
  %105 = vmatprep.subr.bf16.mxu0 0
  %106 = vmatpush1.bf16.msra.mxu0 0
  %107 = vmatprep.subr.bf16.mxu0 0
  %108 = vmatpush1.bf16.msra.mxu0 0
  %109 = vmatprep.subr.bf16.mxu0 0
  %110 = vmatpush1.bf16.msra.mxu0 0
  %111 = vmatprep.subr.bf16.mxu0 0
  %112 = vmatpush1.bf16.msra.mxu0 0
  %113 = vmatprep.mubr.bf16.mxu0 0
  %114 = vmatmul.mubr.bf16.gmra.mrb[0].mxu0 %v76
  %v115 = vpop.f32.mrb[0].mxu0
  %v116 = vadd.f32 0.0, %v115
  %v117 = vpop.f32.mrb[0].mxu0
  %v118 = vpop.f32.mrb[0].mxu0
  %v119 = vadd.f32 0.0, %v118
  %v120 = vpop.f32.mrb[0].mxu0
  %121 = vmatprep.mubr.bf16.mxu0 0
  %122 = vmatmul.mubr.bf16.gmra.mrb[0].mxu0 %v79
  %v123 = vpop.f32.mrb[0].mxu0
  %v124 = vadd.f32 0.0, %v123
  %v125 = vpop.f32.mrb[0].mxu0
  %v126 = vpop.f32.mrb[0].mxu0
  %v127 = vadd.f32 0.0, %v126
  %v128 = vpop.f32.mrb[0].mxu0
  %129 = vdwg.mxu0
  %v130 = vpack.c.bf16 %v119, %v116
  %v131 = vpack.c.bf16 %v127, %v124
  %v132 = vld [vmem:[%s4] sm:$0xff]
  %v133 = vld [vmem:[%s4 + $0x8] sm:$0xff]
  %v134 = vld [vmem:[%s4 + $0x10] sm:$0xff]
  %v135 = vld [vmem:[%s4 + $0x18] sm:$0xff]
  %v136 = vld [vmem:[%s4 + $0x20] sm:$0xff]
  %v137 = vld [vmem:[%s4 + $0x28] sm:$0xff]
  %v138 = vld [vmem:[%s4 + $0x30] sm:$0xff]
  %v139 = vld [vmem:[%s4 + $0x38] sm:$0xff]
  %v140 = vld [vmem:[%s4 + $0x40] sm:$0xff]
  %v141 = vld [vmem:[%s4 + $0x48] sm:$0xff]
  %v142 = vld [vmem:[%s4 + $0x50] sm:$0xff]
  %v143 = vld [vmem:[%s4 + $0x58] sm:$0xff]
  %v144 = vld [vmem:[%s4 + $0x60] sm:$0xff]
  %v145 = vld [vmem:[%s4 + $0x68] sm:$0xff]
  %v146 = vld [vmem:[%s4 + $0x70] sm:$0xff]
  %v147 = vld [vmem:[%s4 + $0x78] sm:$0xff]
  %s148 = scalar_lea.vmem %s4, 128
  %v149 = vld [vmem:[%s148] sm:$0xff]
  %v150 = vld [vmem:[%s148 + $0x8] sm:$0xff]
  %v151 = vld [vmem:[%s148 + $0x10] sm:$0xff]
  %v152 = vld [vmem:[%s148 + $0x18] sm:$0xff]
  %v153 = vld [vmem:[%s148 + $0x20] sm:$0xff]
  %v154 = vld [vmem:[%s148 + $0x28] sm:$0xff]
  %v155 = vld [vmem:[%s148 + $0x30] sm:$0xff]
  %v156 = vld [vmem:[%s148 + $0x38] sm:$0xff]
  %v157 = vld [vmem:[%s148 + $0x40] sm:$0xff]
  %v158 = vld [vmem:[%s148 + $0x48] sm:$0xff]
  %v159 = vld [vmem:[%s148 + $0x50] sm:$0xff]
  %v160 = vld [vmem:[%s148 + $0x58] sm:$0xff]
  %v161 = vld [vmem:[%s148 + $0x60] sm:$0xff]
  %v162 = vld [vmem:[%s148 + $0x68] sm:$0xff]
  %v163 = vld [vmem:[%s148 + $0x70] sm:$0xff]
  %v164 = vld [vmem:[%s148 + $0x78] sm:$0xff]
  %v181 = vunpack.c.l.b16 %v149
  %v182 = vunpack.c.h.b16 %v149
  %v183 = vunpack.c.l.b16 %v150
  %v184 = vunpack.c.h.b16 %v150
  %v185 = vunpack.c.l.b16 %v151
  %v186 = vunpack.c.h.b16 %v151
  %v187 = vunpack.c.l.b16 %v152
  %v188 = vunpack.c.h.b16 %v152
  %v189 = vunpack.c.l.b16 %v153
  %v190 = vunpack.c.h.b16 %v153
  %v191 = vunpack.c.l.b16 %v154
  %v192 = vunpack.c.h.b16 %v154
  %v193 = vunpack.c.l.b16 %v155
  %v194 = vunpack.c.h.b16 %v155
  %v195 = vunpack.c.l.b16 %v156
  %v196 = vunpack.c.h.b16 %v156
  %v197 = vunpack.c.l.b16 %v157
  %v198 = vunpack.c.h.b16 %v157
  %v199 = vunpack.c.l.b16 %v158
  %v200 = vunpack.c.h.b16 %v158
  %v201 = vunpack.c.l.b16 %v159
  %v202 = vunpack.c.h.b16 %v159
  %v203 = vunpack.c.l.b16 %v160
  %v204 = vunpack.c.h.b16 %v160
  %v205 = vunpack.c.l.b16 %v161
  %v206 = vunpack.c.h.b16 %v161
  %v207 = vunpack.c.l.b16 %v162
  %v208 = vunpack.c.h.b16 %v162
  %v209 = vunpack.c.l.b16 %v163
  %v210 = vunpack.c.h.b16 %v163
  %v211 = vunpack.c.l.b16 %v164
  %v212 = vunpack.c.h.b16 %v164
  %v213 = vpack.c.b16 %v183, %v181
  %v214 = vpack.c.b16 %v184, %v182
  %v215 = vpack.c.b16 %v187, %v185
  %v216 = vpack.c.b16 %v188, %v186
  %v217 = vpack.c.b16 %v191, %v189
  %v218 = vpack.c.b16 %v192, %v190
  %v219 = vpack.c.b16 %v195, %v193
  %v220 = vpack.c.b16 %v196, %v194
  %v221 = vpack.c.b16 %v199, %v197
  %v222 = vpack.c.b16 %v200, %v198
  %v223 = vpack.c.b16 %v203, %v201
  %v224 = vpack.c.b16 %v204, %v202
  %v225 = vpack.c.b16 %v207, %v205
  %v226 = vpack.c.b16 %v208, %v206
  %v227 = vpack.c.b16 %v211, %v209
  %v228 = vpack.c.b16 %v212, %v210
  %245 = vmatprep.subr.bf16.mxu0 %v214
  %246 = vmatpush1.bf16.msra.mxu0 %v213
  %247 = vmatprep.subr.bf16.mxu0 %v216
  %248 = vmatpush1.bf16.msra.mxu0 %v215
  %249 = vmatprep.subr.bf16.mxu0 %v218
  %250 = vmatpush1.bf16.msra.mxu0 %v217
  %251 = vmatprep.subr.bf16.mxu0 %v220
  %252 = vmatpush1.bf16.msra.mxu0 %v219
  %253 = vmatprep.subr.bf16.mxu0 %v222
  %254 = vmatpush1.bf16.msra.mxu0 %v221
  %255 = vmatprep.subr.bf16.mxu0 %v224
  %256 = vmatpush1.bf16.msra.mxu0 %v223
  %257 = vmatprep.subr.bf16.mxu0 %v226
  %258 = vmatpush1.bf16.msra.mxu0 %v225
  %259 = vmatprep.subr.bf16.mxu0 %v228
  %260 = vmatpush1.bf16.msra.mxu0 %v227
  %261 = vmatprep.subr.bf16.mxu0 0
  %262 = vmatpush1.bf16.msra.mxu0 0
  %263 = vmatprep.subr.bf16.mxu0 0
  %264 = vmatpush1.bf16.msra.mxu0 0
  %265 = vmatprep.subr.bf16.mxu0 0
  %266 = vmatpush1.bf16.msra.mxu0 0
  %267 = vmatprep.subr.bf16.mxu0 0
  %268 = vmatpush1.bf16.msra.mxu0 0
  %269 = vmatprep.subr.bf16.mxu0 0
  %270 = vmatpush1.bf16.msra.mxu0 0
  %271 = vmatprep.subr.bf16.mxu0 0
  %272 = vmatpush1.bf16.msra.mxu0 0
  %273 = vmatprep.subr.bf16.mxu0 0
  %274 = vmatpush1.bf16.msra.mxu0 0
  %275 = vmatprep.subr.bf16.mxu0 0
  %276 = vmatpush1.bf16.msra.mxu0 0
  %277 = vmatprep.mubr.bf16.mxu0 0
  %278 = vmatmul.mubr.bf16.gmra.mrb[0].mxu0 %v58
  %v279 = vpop.f32.mrb[0].mxu0
  %v280 = vadd.f32 0.0, %v279
  %v281 = vpop.f32.mrb[0].mxu0
  %v282 = vadd.f32 0.0, %v281
  %v283 = vpop.f32.mrb[0].mxu0
  %v284 = vadd.f32 0.0, %v283
  %v285 = vpop.f32.mrb[0].mxu0
  %v286 = vadd.f32 0.0, %v285
  %287 = vmatprep.mubr.bf16.mxu0 0
  %288 = vmatmul.mubr.bf16.gmra.mrb[0].mxu0 %v59
  %v289 = vpop.f32.mrb[0].mxu0
  %v290 = vadd.f32 0.0, %v289
  %v291 = vpop.f32.mrb[0].mxu0
  %v292 = vadd.f32 0.0, %v291
  %v293 = vpop.f32.mrb[0].mxu0
  %v294 = vadd.f32 0.0, %v293
  %v295 = vpop.f32.mrb[0].mxu0
  %v296 = vadd.f32 0.0, %v295
  %297 = vdwg.mxu0
  %v314 = vunpack.c.l.b16 %v132
  %v315 = vunpack.c.h.b16 %v132
  %v316 = vunpack.c.l.b16 %v133
  %v317 = vunpack.c.h.b16 %v133
  %v318 = vunpack.c.l.b16 %v134
  %v319 = vunpack.c.h.b16 %v134
  %v320 = vunpack.c.l.b16 %v135
  %v321 = vunpack.c.h.b16 %v135
  %v322 = vunpack.c.l.b16 %v136
  %v323 = vunpack.c.h.b16 %v136
  %v324 = vunpack.c.l.b16 %v137
  %v325 = vunpack.c.h.b16 %v137
  %v326 = vunpack.c.l.b16 %v138
  %v327 = vunpack.c.h.b16 %v138
  %v328 = vunpack.c.l.b16 %v139
  %v329 = vunpack.c.h.b16 %v139
  %v330 = vunpack.c.l.b16 %v140
  %v331 = vunpack.c.h.b16 %v140
  %v332 = vunpack.c.l.b16 %v141
  %v333 = vunpack.c.h.b16 %v141
  %v334 = vunpack.c.l.b16 %v142
  %v335 = vunpack.c.h.b16 %v142
  %v336 = vunpack.c.l.b16 %v143
  %v337 = vunpack.c.h.b16 %v143
  %v338 = vunpack.c.l.b16 %v144
  %v339 = vunpack.c.h.b16 %v144
  %v340 = vunpack.c.l.b16 %v145
  %v341 = vunpack.c.h.b16 %v145
  %v342 = vunpack.c.l.b16 %v146
  %v343 = vunpack.c.h.b16 %v146
  %v344 = vunpack.c.l.b16 %v147
  %v345 = vunpack.c.h.b16 %v147
  %v346 = vpack.c.b16 %v316, %v314
  %v347 = vpack.c.b16 %v317, %v315
  %v348 = vpack.c.b16 %v320, %v318
  %v349 = vpack.c.b16 %v321, %v319
  %v350 = vpack.c.b16 %v324, %v322
  %v351 = vpack.c.b16 %v325, %v323
  %v352 = vpack.c.b16 %v328, %v326
  %v353 = vpack.c.b16 %v329, %v327
  %v354 = vpack.c.b16 %v332, %v330
  %v355 = vpack.c.b16 %v333, %v331
  %v356 = vpack.c.b16 %v336, %v334
  %v357 = vpack.c.b16 %v337, %v335
  %v358 = vpack.c.b16 %v340, %v338
  %v359 = vpack.c.b16 %v341, %v339
  %v360 = vpack.c.b16 %v344, %v342
  %v361 = vpack.c.b16 %v345, %v343
  %378 = vmatprep.subr.bf16.mxu0 %v347
  %379 = vmatpush1.bf16.msra.mxu0 %v346
  %380 = vmatprep.subr.bf16.mxu0 %v349
  %381 = vmatpush1.bf16.msra.mxu0 %v348
  %382 = vmatprep.subr.bf16.mxu0 %v351
  %383 = vmatpush1.bf16.msra.mxu0 %v350
  %384 = vmatprep.subr.bf16.mxu0 %v353
  %385 = vmatpush1.bf16.msra.mxu0 %v352
  %386 = vmatprep.subr.bf16.mxu0 %v355
  %387 = vmatpush1.bf16.msra.mxu0 %v354
  %388 = vmatprep.subr.bf16.mxu0 %v357
  %389 = vmatpush1.bf16.msra.mxu0 %v356
  %390 = vmatprep.subr.bf16.mxu0 %v359
  %391 = vmatpush1.bf16.msra.mxu0 %v358
  %392 = vmatprep.subr.bf16.mxu0 %v361
  %393 = vmatpush1.bf16.msra.mxu0 %v360
  %394 = vmatprep.subr.bf16.mxu0 0
  %395 = vmatpush1.bf16.msra.mxu0 0
  %396 = vmatprep.subr.bf16.mxu0 0
  %397 = vmatpush1.bf16.msra.mxu0 0
  %398 = vmatprep.subr.bf16.mxu0 0
  %399 = vmatpush1.bf16.msra.mxu0 0
  %400 = vmatprep.subr.bf16.mxu0 0
  %401 = vmatpush1.bf16.msra.mxu0 0
  %402 = vmatprep.subr.bf16.mxu0 0
  %403 = vmatpush1.bf16.msra.mxu0 0
  %404 = vmatprep.subr.bf16.mxu0 0
  %405 = vmatpush1.bf16.msra.mxu0 0
  %406 = vmatprep.subr.bf16.mxu0 0
  %407 = vmatpush1.bf16.msra.mxu0 0
  %408 = vmatprep.subr.bf16.mxu0 0
  %409 = vmatpush1.bf16.msra.mxu0 0
  %410 = vmatprep.mubr.bf16.mxu0 0
  %411 = vmatmul.mubr.bf16.gmra.mrb[0].mxu0 %v130
  %v412 = vpop.f32.mrb[0].mxu0
  %v413 = vadd.f32 %v280, %v412
  %v414 = vpop.f32.mrb[0].mxu0
  %v415 = vadd.f32 %v282, %v414
  %v416 = vpop.f32.mrb[0].mxu0
  %v417 = vadd.f32 %v284, %v416
  %v418 = vpop.f32.mrb[0].mxu0
  %v419 = vadd.f32 %v286, %v418
  %420 = vmatprep.mubr.bf16.mxu0 0
  %421 = vmatmul.mubr.bf16.gmra.mrb[0].mxu0 %v131
  %v422 = vpop.f32.mrb[0].mxu0
  %v423 = vadd.f32 %v290, %v422
  %v424 = vpop.f32.mrb[0].mxu0
  %v425 = vadd.f32 %v292, %v424
  %v426 = vpop.f32.mrb[0].mxu0
  %v427 = vadd.f32 %v294, %v426
  %v428 = vpop.f32.mrb[0].mxu0
  %v429 = vadd.f32 %v296, %v428
  %430 = vdwg.mxu0
  %v431 = vld [vmem:[%s5] sm:$0x3]
  %v433 = vlaneseq
  %v434 = vshrl.u32 %v433, 7
  %v435 = vsub.s32 0, %v434
  %v436 = vrot.slane %v431, %v435
  %v437 = vlaneseq
  %v438 = vshrl.u32 %v437, 7
  %v439 = vsub.s32 1, %v438
  %v440 = vrot.slane %v431, %v439
  %v443 = vadd.f32 %v413, %v436
  %v444 = vadd.f32 %v415, %v440
  %v445 = vadd.f32 %v417, %v436
  %v446 = vadd.f32 %v419, %v440
  %v447 = vadd.f32 %v423, %v436
  %v448 = vadd.f32 %v425, %v440
  %v449 = vadd.f32 %v427, %v436
  %v450 = vadd.f32 %v429, %v440
  %v451 = vmax.f32 %v443, 0.0
  %v452 = vmax.f32 %v445, 0.0
  %v453 = vmax.f32 %v447, 0.0
  %v454 = vmax.f32 %v449, 0.0
  %v455 = vpack.c.bf16 %v452, %v451
  %v456 = vpack.c.bf16 %v454, %v453
  %457 = vmatprep.subr.bf16.mxu0 0
  %458 = vmatpush1.bf16.msra.mxu0 %v455
  %459 = vmatprep.subr.bf16.mxu0 0
  %460 = vmatpush1.bf16.msra.mxu0 %v456
  %461 = vmatprep.subr.bf16.mxu0 0
  %462 = vmatpush1.bf16.msra.mxu0 0
  %463 = vmatprep.subr.bf16.mxu0 0
  %464 = vmatpush1.bf16.msra.mxu0 0
  %465 = vmatprep.subr.bf16.mxu0 0
  %466 = vmatpush1.bf16.msra.mxu0 0
  %467 = vmatprep.subr.bf16.mxu0 0
  %468 = vmatpush1.bf16.msra.mxu0 0
  %469 = vmatprep.subr.bf16.mxu0 0
  %470 = vmatpush1.bf16.msra.mxu0 0
  %471 = vmatprep.subr.bf16.mxu0 0
  %472 = vmatpush1.bf16.msra.mxu0 0
  %473 = vmatprep.subr.bf16.mxu0 0
  %474 = vmatpush1.bf16.msra.mxu0 0
  %475 = vmatprep.subr.bf16.mxu0 0
  %476 = vmatpush1.bf16.msra.mxu0 0
  %477 = vmatprep.subr.bf16.mxu0 0
  %478 = vmatpush1.bf16.msra.mxu0 0
  %479 = vmatprep.subr.bf16.mxu0 0
  %480 = vmatpush1.bf16.msra.mxu0 0
  %481 = vmatprep.subr.bf16.mxu0 0
  %482 = vmatpush1.bf16.msra.mxu0 0
  %483 = vmatprep.subr.bf16.mxu0 0
  %484 = vmatpush1.bf16.msra.mxu0 0
  %485 = vmatprep.subr.bf16.mxu0 0
  %486 = vmatpush1.bf16.msra.mxu0 0
  %487 = vmatprep.subr.bf16.mxu0 0
  %488 = vmatpush1.bf16.msra.mxu0 0
  %489 = vmatprep.mubr.bf16.mxu0 0
  %490 = vmatmul.mubr.bf16.gmra.mrb[0].mxu0 %v76
  %v491 = vpop.f32.mrb[0].mxu0
  %v492 = vadd.f32 0.0, %v491
  %v493 = vpop.f32.mrb[0].mxu0
  %v494 = vpop.f32.mrb[0].mxu0
  %v495 = vadd.f32 0.0, %v494
  %v496 = vpop.f32.mrb[0].mxu0
  %497 = vmatprep.mubr.bf16.mxu0 0
  %498 = vmatmul.mubr.bf16.gmra.mrb[0].mxu0 %v79
  %v499 = vpop.f32.mrb[0].mxu0
  %v500 = vadd.f32 0.0, %v499
  %v501 = vpop.f32.mrb[0].mxu0
  %v502 = vpop.f32.mrb[0].mxu0
  %v503 = vadd.f32 0.0, %v502
  %v504 = vpop.f32.mrb[0].mxu0
  %505 = vdwg.mxu0
  %v506 = vpack.c.bf16 %v495, %v492
  %v507 = vpack.c.bf16 %v503, %v500
  %v508 = vld [vmem:[%s6] sm:$0xf]
  %v509 = vld [vmem:[%s6 + $0x4] sm:$0xf]
  %v510 = vld [vmem:[%s6 + $0x8] sm:$0xf]
  %v511 = vld [vmem:[%s6 + $0xc] sm:$0xf]
  %v512 = vld [vmem:[%s6 + $0x10] sm:$0xf]
  %v513 = vld [vmem:[%s6 + $0x14] sm:$0xf]
  %v514 = vld [vmem:[%s6 + $0x18] sm:$0xf]
  %v515 = vld [vmem:[%s6 + $0x1c] sm:$0xf]
  %v516 = vld [vmem:[%s6 + $0x20] sm:$0xf]
  %v517 = vld [vmem:[%s6 + $0x24] sm:$0xf]
  %v518 = vld [vmem:[%s6 + $0x28] sm:$0xf]
  %v519 = vld [vmem:[%s6 + $0x2c] sm:$0xf]
  %v520 = vld [vmem:[%s6 + $0x30] sm:$0xf]
  %v521 = vld [vmem:[%s6 + $0x34] sm:$0xf]
  %v522 = vld [vmem:[%s6 + $0x38] sm:$0xf]
  %v523 = vld [vmem:[%s6 + $0x3c] sm:$0xf]
  %s524 = scalar_lea.vmem %s6, 64
  %v525 = vld [vmem:[%s524] sm:$0xf]
  %v526 = vld [vmem:[%s524 + $0x4] sm:$0xf]
  %v527 = vld [vmem:[%s524 + $0x8] sm:$0xf]
  %v528 = vld [vmem:[%s524 + $0xc] sm:$0xf]
  %v529 = vld [vmem:[%s524 + $0x10] sm:$0xf]
  %v530 = vld [vmem:[%s524 + $0x14] sm:$0xf]
  %v531 = vld [vmem:[%s524 + $0x18] sm:$0xf]
  %v532 = vld [vmem:[%s524 + $0x1c] sm:$0xf]
  %v533 = vld [vmem:[%s524 + $0x20] sm:$0xf]
  %v534 = vld [vmem:[%s524 + $0x24] sm:$0xf]
  %v535 = vld [vmem:[%s524 + $0x28] sm:$0xf]
  %v536 = vld [vmem:[%s524 + $0x2c] sm:$0xf]
  %v537 = vld [vmem:[%s524 + $0x30] sm:$0xf]
  %v538 = vld [vmem:[%s524 + $0x34] sm:$0xf]
  %v539 = vld [vmem:[%s524 + $0x38] sm:$0xf]
  %v540 = vld [vmem:[%s524 + $0x3c] sm:$0xf]
  %v557 = vunpack.c.l.b16 %v525
  %v558 = vunpack.c.l.b16 %v526
  %v559 = vunpack.c.l.b16 %v527
  %v560 = vunpack.c.l.b16 %v528
  %v561 = vunpack.c.l.b16 %v529
  %v562 = vunpack.c.l.b16 %v530
  %v563 = vunpack.c.l.b16 %v531
  %v564 = vunpack.c.l.b16 %v532
  %v565 = vunpack.c.l.b16 %v533
  %v566 = vunpack.c.l.b16 %v534
  %v567 = vunpack.c.l.b16 %v535
  %v568 = vunpack.c.l.b16 %v536
  %v569 = vunpack.c.l.b16 %v537
  %v570 = vunpack.c.l.b16 %v538
  %v571 = vunpack.c.l.b16 %v539
  %v572 = vunpack.c.l.b16 %v540
  %v573 = vpack.c.b16 %v558, %v557
  %v574 = vpack.c.b16 %v560, %v559
  %v575 = vpack.c.b16 %v562, %v561
  %v576 = vpack.c.b16 %v564, %v563
  %v577 = vpack.c.b16 %v566, %v565
  %v578 = vpack.c.b16 %v568, %v567
  %v579 = vpack.c.b16 %v570, %v569
  %v580 = vpack.c.b16 %v572, %v571
  %589 = vmatprep.subr.bf16.mxu0 0
  %590 = vmatpush1.bf16.msra.mxu0 %v573
  %591 = vmatprep.subr.bf16.mxu0 0
  %592 = vmatpush1.bf16.msra.mxu0 %v574
  %593 = vmatprep.subr.bf16.mxu0 0
  %594 = vmatpush1.bf16.msra.mxu0 %v575
  %595 = vmatprep.subr.bf16.mxu0 0
  %596 = vmatpush1.bf16.msra.mxu0 %v576
  %597 = vmatprep.subr.bf16.mxu0 0
  %598 = vmatpush1.bf16.msra.mxu0 %v577
  %599 = vmatprep.subr.bf16.mxu0 0
  %600 = vmatpush1.bf16.msra.mxu0 %v578
  %601 = vmatprep.subr.bf16.mxu0 0
  %602 = vmatpush1.bf16.msra.mxu0 %v579
  %603 = vmatprep.subr.bf16.mxu0 0
  %604 = vmatpush1.bf16.msra.mxu0 %v580
  %605 = vmatprep.subr.bf16.mxu0 0
  %606 = vmatpush1.bf16.msra.mxu0 0
  %607 = vmatprep.subr.bf16.mxu0 0
  %608 = vmatpush1.bf16.msra.mxu0 0
  %609 = vmatprep.subr.bf16.mxu0 0
  %610 = vmatpush1.bf16.msra.mxu0 0
  %611 = vmatprep.subr.bf16.mxu0 0
  %612 = vmatpush1.bf16.msra.mxu0 0
  %613 = vmatprep.subr.bf16.mxu0 0
  %614 = vmatpush1.bf16.msra.mxu0 0
  %615 = vmatprep.subr.bf16.mxu0 0
  %616 = vmatpush1.bf16.msra.mxu0 0
  %617 = vmatprep.subr.bf16.mxu0 0
  %618 = vmatpush1.bf16.msra.mxu0 0
  %619 = vmatprep.subr.bf16.mxu0 0
  %620 = vmatpush1.bf16.msra.mxu0 0
  %621 = vmatprep.mubr.bf16.mxu0 0
  %622 = vmatmul.mubr.bf16.gmra.mrb[0].mxu0 %v455
  %v623 = vpop.f32.mrb[0].mxu0
  %v624 = vadd.f32 0.0, %v623
  %v625 = vpop.f32.mrb[0].mxu0
  %v626 = vpop.f32.mrb[0].mxu0
  %v627 = vadd.f32 0.0, %v626
  %v628 = vpop.f32.mrb[0].mxu0
  %629 = vmatprep.mubr.bf16.mxu0 0
  %630 = vmatmul.mubr.bf16.gmra.mrb[0].mxu0 %v456
  %v631 = vpop.f32.mrb[0].mxu0
  %v632 = vadd.f32 0.0, %v631
  %v633 = vpop.f32.mrb[0].mxu0
  %v634 = vpop.f32.mrb[0].mxu0
  %v635 = vadd.f32 0.0, %v634
  %v636 = vpop.f32.mrb[0].mxu0
  %637 = vdwg.mxu0
  %v654 = vunpack.c.l.b16 %v508
  %v655 = vunpack.c.l.b16 %v509
  %v656 = vunpack.c.l.b16 %v510
  %v657 = vunpack.c.l.b16 %v511
  %v658 = vunpack.c.l.b16 %v512
  %v659 = vunpack.c.l.b16 %v513
  %v660 = vunpack.c.l.b16 %v514
  %v661 = vunpack.c.l.b16 %v515
  %v662 = vunpack.c.l.b16 %v516
  %v663 = vunpack.c.l.b16 %v517
  %v664 = vunpack.c.l.b16 %v518
  %v665 = vunpack.c.l.b16 %v519
  %v666 = vunpack.c.l.b16 %v520
  %v667 = vunpack.c.l.b16 %v521
  %v668 = vunpack.c.l.b16 %v522
  %v669 = vunpack.c.l.b16 %v523
  %v670 = vpack.c.b16 %v655, %v654
  %v671 = vpack.c.b16 %v657, %v656
  %v672 = vpack.c.b16 %v659, %v658
  %v673 = vpack.c.b16 %v661, %v660
  %v674 = vpack.c.b16 %v663, %v662
  %v675 = vpack.c.b16 %v665, %v664
  %v676 = vpack.c.b16 %v667, %v666
  %v677 = vpack.c.b16 %v669, %v668
  %686 = vmatprep.subr.bf16.mxu0 0
  %687 = vmatpush1.bf16.msra.mxu0 %v670
  %688 = vmatprep.subr.bf16.mxu0 0
  %689 = vmatpush1.bf16.msra.mxu0 %v671
  %690 = vmatprep.subr.bf16.mxu0 0
  %691 = vmatpush1.bf16.msra.mxu0 %v672
  %692 = vmatprep.subr.bf16.mxu0 0
  %693 = vmatpush1.bf16.msra.mxu0 %v673
  %694 = vmatprep.subr.bf16.mxu0 0
  %695 = vmatpush1.bf16.msra.mxu0 %v674
  %696 = vmatprep.subr.bf16.mxu0 0
  %697 = vmatpush1.bf16.msra.mxu0 %v675
  %698 = vmatprep.subr.bf16.mxu0 0
  %699 = vmatpush1.bf16.msra.mxu0 %v676
  %700 = vmatprep.subr.bf16.mxu0 0
  %701 = vmatpush1.bf16.msra.mxu0 %v677
  %702 = vmatprep.subr.bf16.mxu0 0
  %703 = vmatpush1.bf16.msra.mxu0 0
  %704 = vmatprep.subr.bf16.mxu0 0
  %705 = vmatpush1.bf16.msra.mxu0 0
  %706 = vmatprep.subr.bf16.mxu0 0
  %707 = vmatpush1.bf16.msra.mxu0 0
  %708 = vmatprep.subr.bf16.mxu0 0
  %709 = vmatpush1.bf16.msra.mxu0 0
  %710 = vmatprep.subr.bf16.mxu0 0
  %711 = vmatpush1.bf16.msra.mxu0 0
  %712 = vmatprep.subr.bf16.mxu0 0
  %713 = vmatpush1.bf16.msra.mxu0 0
  %714 = vmatprep.subr.bf16.mxu0 0
  %715 = vmatpush1.bf16.msra.mxu0 0
  %716 = vmatprep.subr.bf16.mxu0 0
  %717 = vmatpush1.bf16.msra.mxu0 0
  %718 = vmatprep.mubr.bf16.mxu0 0
  %719 = vmatmul.mubr.bf16.gmra.mrb[0].mxu0 %v506
  %v720 = vpop.f32.mrb[0].mxu0
  %v721 = vadd.f32 %v624, %v720
  %v722 = vpop.f32.mrb[0].mxu0
  %v723 = vpop.f32.mrb[0].mxu0
  %v724 = vadd.f32 %v627, %v723
  %v725 = vpop.f32.mrb[0].mxu0
  %726 = vmatprep.mubr.bf16.mxu0 0
  %727 = vmatmul.mubr.bf16.gmra.mrb[0].mxu0 %v507
  %v728 = vpop.f32.mrb[0].mxu0
  %v729 = vadd.f32 %v632, %v728
  %v730 = vpop.f32.mrb[0].mxu0
  %v731 = vpop.f32.mrb[0].mxu0
  %v732 = vadd.f32 %v635, %v731
  %v733 = vpop.f32.mrb[0].mxu0
  %734 = vdwg.mxu0
  %v735 = vld [vmem:[%s7] sm:$0x1]
  %v737 = vlaneseq
  %v738 = vshrl.u32 %v737, 7
  %v739 = vsub.s32 0, %v738
  %v740 = vrot.slane %v735, %v739
  %v742 = vadd.f32 %v721, %v740
  %v743 = vadd.f32 %v724, %v740
  %v744 = vadd.f32 %v729, %v740
  %v745 = vadd.f32 %v732, %v740
  %v746 = vmax.f32 %v742, 0.0
  %v747 = vmax.f32 %v743, 0.0
  %v748 = vmax.f32 %v744, 0.0
  %v749 = vmax.f32 %v745, 0.0
  %v750 = vadd.f32 %v746, %v444
  %v751 = vadd.f32 %v747, %v446
  %v752 = vadd.f32 %v748, %v448
  %v753 = vadd.f32 %v749, %v450
  %v754 = vmax.f32 %v750, 0.0
  %v755 = vmax.f32 %v751, 0.0
  %v756 = vmax.f32 %v752, 0.0
  %v757 = vmax.f32 %v753, 0.0
  %v758 = vpack.c.bf16 %v755, %v754
  %v759 = vpack.c.bf16 %v757, %v756
  %v760 = vld [vmem:[%s2] sm:$0xf]
  %v761 = vld [vmem:[%s2 + $0x4] sm:$0xf]
  %v762 = vld [vmem:[%s2 + $0x8] sm:$0xf]
  %v763 = vld [vmem:[%s2 + $0xc] sm:$0xf]
  %v768 = vunpack.c.l.b16 %v760
  %v769 = vunpack.c.l.b16 %v761
  %v770 = vunpack.c.l.b16 %v762
  %v771 = vunpack.c.l.b16 %v763
  %v772 = vpack.c.b16 %v769, %v768
  %v773 = vpack.c.b16 %v771, %v770
  %v775 = vsel %vm74, %v772, 0
  %v778 = vsel %vm74, %v773, 0
  %780 = vmatprep.subr.bf16.mxu0 0
  %781 = vmatpush1.bf16.msra.mxu0 %v758
  %782 = vmatprep.subr.bf16.mxu0 0
  %783 = vmatpush1.bf16.msra.mxu0 %v759
  %784 = vmatprep.subr.bf16.mxu0 0
  %785 = vmatpush1.bf16.msra.mxu0 0
  %786 = vmatprep.subr.bf16.mxu0 0
  %787 = vmatpush1.bf16.msra.mxu0 0
  %788 = vmatprep.subr.bf16.mxu0 0
  %789 = vmatpush1.bf16.msra.mxu0 0
  %790 = vmatprep.subr.bf16.mxu0 0
  %791 = vmatpush1.bf16.msra.mxu0 0
  %792 = vmatprep.subr.bf16.mxu0 0
  %793 = vmatpush1.bf16.msra.mxu0 0
  %794 = vmatprep.subr.bf16.mxu0 0
  %795 = vmatpush1.bf16.msra.mxu0 0
  %796 = vmatprep.subr.bf16.mxu0 0
  %797 = vmatpush1.bf16.msra.mxu0 0
  %798 = vmatprep.subr.bf16.mxu0 0
  %799 = vmatpush1.bf16.msra.mxu0 0
  %800 = vmatprep.subr.bf16.mxu0 0
  %801 = vmatpush1.bf16.msra.mxu0 0
  %802 = vmatprep.subr.bf16.mxu0 0
  %803 = vmatpush1.bf16.msra.mxu0 0
  %804 = vmatprep.subr.bf16.mxu0 0
  %805 = vmatpush1.bf16.msra.mxu0 0
  %806 = vmatprep.subr.bf16.mxu0 0
  %807 = vmatpush1.bf16.msra.mxu0 0
  %808 = vmatprep.subr.bf16.mxu0 0
  %809 = vmatpush1.bf16.msra.mxu0 0
  %810 = vmatprep.subr.bf16.mxu0 0
  %811 = vmatpush1.bf16.msra.mxu0 0
  %812 = vmatprep.mubr.bf16.mxu0 0
  %813 = vmatmul.mubr.bf16.gmra.mrb[0].mxu0 %v775
  %v814 = vpop.f32.mrb[0].mxu0
  %v815 = vadd.f32 0.0, %v814
  %v816 = vpop.f32.mrb[0].mxu0
  %v817 = vpop.f32.mrb[0].mxu0
  %v818 = vadd.f32 0.0, %v817
  %v819 = vpop.f32.mrb[0].mxu0
  %820 = vmatprep.mubr.bf16.mxu0 0
  %821 = vmatmul.mubr.bf16.gmra.mrb[0].mxu0 %v778
  %v822 = vpop.f32.mrb[0].mxu0
  %v823 = vadd.f32 0.0, %v822
  %v824 = vpop.f32.mrb[0].mxu0
  %v825 = vpop.f32.mrb[0].mxu0
  %v826 = vadd.f32 0.0, %v825
  %v827 = vpop.f32.mrb[0].mxu0
  %828 = vdwg.mxu0
  %v829 = vpack.c.bf16 %v818, %v815
  %v830 = vpack.c.bf16 %v826, %v823
  %v831 = vld [vmem:[%s8] sm:$0xf]
  %v832 = vld [vmem:[%s8 + $0x4] sm:$0xf]
  %v833 = vld [vmem:[%s8 + $0x8] sm:$0xf]
  %v834 = vld [vmem:[%s8 + $0xc] sm:$0xf]
  %v835 = vld [vmem:[%s8 + $0x10] sm:$0xf]
  %v836 = vld [vmem:[%s8 + $0x14] sm:$0xf]
  %v837 = vld [vmem:[%s8 + $0x18] sm:$0xf]
  %v838 = vld [vmem:[%s8 + $0x1c] sm:$0xf]
  %v839 = vld [vmem:[%s8 + $0x20] sm:$0xf]
  %v840 = vld [vmem:[%s8 + $0x24] sm:$0xf]
  %v841 = vld [vmem:[%s8 + $0x28] sm:$0xf]
  %v842 = vld [vmem:[%s8 + $0x2c] sm:$0xf]
  %v843 = vld [vmem:[%s8 + $0x30] sm:$0xf]
  %v844 = vld [vmem:[%s8 + $0x34] sm:$0xf]
  %v845 = vld [vmem:[%s8 + $0x38] sm:$0xf]
  %v846 = vld [vmem:[%s8 + $0x3c] sm:$0xf]
  %s847 = scalar_lea.vmem %s8, 64
  %v848 = vld [vmem:[%s847] sm:$0xf]
  %v849 = vld [vmem:[%s847 + $0x4] sm:$0xf]
  %v850 = vld [vmem:[%s847 + $0x8] sm:$0xf]
  %v851 = vld [vmem:[%s847 + $0xc] sm:$0xf]
  %v852 = vld [vmem:[%s847 + $0x10] sm:$0xf]
  %v853 = vld [vmem:[%s847 + $0x14] sm:$0xf]
  %v854 = vld [vmem:[%s847 + $0x18] sm:$0xf]
  %v855 = vld [vmem:[%s847 + $0x1c] sm:$0xf]
  %v856 = vld [vmem:[%s847 + $0x20] sm:$0xf]
  %v857 = vld [vmem:[%s847 + $0x24] sm:$0xf]
  %v858 = vld [vmem:[%s847 + $0x28] sm:$0xf]
  %v859 = vld [vmem:[%s847 + $0x2c] sm:$0xf]
  %v860 = vld [vmem:[%s847 + $0x30] sm:$0xf]
  %v861 = vld [vmem:[%s847 + $0x34] sm:$0xf]
  %v862 = vld [vmem:[%s847 + $0x38] sm:$0xf]
  %v863 = vld [vmem:[%s847 + $0x3c] sm:$0xf]
  %v880 = vunpack.c.l.b16 %v848
  %v881 = vunpack.c.l.b16 %v849
  %v882 = vunpack.c.l.b16 %v850
  %v883 = vunpack.c.l.b16 %v851
  %v884 = vunpack.c.l.b16 %v852
  %v885 = vunpack.c.l.b16 %v853
  %v886 = vunpack.c.l.b16 %v854
  %v887 = vunpack.c.l.b16 %v855
  %v888 = vunpack.c.l.b16 %v856
  %v889 = vunpack.c.l.b16 %v857
  %v890 = vunpack.c.l.b16 %v858
  %v891 = vunpack.c.l.b16 %v859
  %v892 = vunpack.c.l.b16 %v860
  %v893 = vunpack.c.l.b16 %v861
  %v894 = vunpack.c.l.b16 %v862
  %v895 = vunpack.c.l.b16 %v863
  %v896 = vpack.c.b16 %v881, %v880
  %v897 = vpack.c.b16 %v883, %v882
  %v898 = vpack.c.b16 %v885, %v884
  %v899 = vpack.c.b16 %v887, %v886
  %v900 = vpack.c.b16 %v889, %v888
  %v901 = vpack.c.b16 %v891, %v890
  %v902 = vpack.c.b16 %v893, %v892
  %v903 = vpack.c.b16 %v895, %v894
  %912 = vmatprep.subr.bf16.mxu0 0
  %913 = vmatpush1.bf16.msra.mxu0 %v896
  %914 = vmatprep.subr.bf16.mxu0 0
  %915 = vmatpush1.bf16.msra.mxu0 %v897
  %916 = vmatprep.subr.bf16.mxu0 0
  %917 = vmatpush1.bf16.msra.mxu0 %v898
  %918 = vmatprep.subr.bf16.mxu0 0
  %919 = vmatpush1.bf16.msra.mxu0 %v899
  %920 = vmatprep.subr.bf16.mxu0 0
  %921 = vmatpush1.bf16.msra.mxu0 %v900
  %922 = vmatprep.subr.bf16.mxu0 0
  %923 = vmatpush1.bf16.msra.mxu0 %v901
  %924 = vmatprep.subr.bf16.mxu0 0
  %925 = vmatpush1.bf16.msra.mxu0 %v902
  %926 = vmatprep.subr.bf16.mxu0 0
  %927 = vmatpush1.bf16.msra.mxu0 %v903
  %928 = vmatprep.subr.bf16.mxu0 0
  %929 = vmatpush1.bf16.msra.mxu0 0
  %930 = vmatprep.subr.bf16.mxu0 0
  %931 = vmatpush1.bf16.msra.mxu0 0
  %932 = vmatprep.subr.bf16.mxu0 0
  %933 = vmatpush1.bf16.msra.mxu0 0
  %934 = vmatprep.subr.bf16.mxu0 0
  %935 = vmatpush1.bf16.msra.mxu0 0
  %936 = vmatprep.subr.bf16.mxu0 0
  %937 = vmatpush1.bf16.msra.mxu0 0
  %938 = vmatprep.subr.bf16.mxu0 0
  %939 = vmatpush1.bf16.msra.mxu0 0
  %940 = vmatprep.subr.bf16.mxu0 0
  %941 = vmatpush1.bf16.msra.mxu0 0
  %942 = vmatprep.subr.bf16.mxu0 0
  %943 = vmatpush1.bf16.msra.mxu0 0
  %944 = vmatprep.mubr.bf16.mxu0 0
  %945 = vmatmul.mubr.bf16.gmra.mrb[0].mxu0 %v758
  %v946 = vpop.f32.mrb[0].mxu0
  %v947 = vadd.f32 0.0, %v946
  %v948 = vpop.f32.mrb[0].mxu0
  %v949 = vpop.f32.mrb[0].mxu0
  %v950 = vadd.f32 0.0, %v949
  %v951 = vpop.f32.mrb[0].mxu0
  %952 = vmatprep.mubr.bf16.mxu0 0
  %953 = vmatmul.mubr.bf16.gmra.mrb[0].mxu0 %v759
  %v954 = vpop.f32.mrb[0].mxu0
  %v955 = vadd.f32 0.0, %v954
  %v956 = vpop.f32.mrb[0].mxu0
  %v957 = vpop.f32.mrb[0].mxu0
  %v958 = vadd.f32 0.0, %v957
  %v959 = vpop.f32.mrb[0].mxu0
  %960 = vdwg.mxu0
  %v977 = vunpack.c.l.b16 %v831
  %v978 = vunpack.c.l.b16 %v832
  %v979 = vunpack.c.l.b16 %v833
  %v980 = vunpack.c.l.b16 %v834
  %v981 = vunpack.c.l.b16 %v835
  %v982 = vunpack.c.l.b16 %v836
  %v983 = vunpack.c.l.b16 %v837
  %v984 = vunpack.c.l.b16 %v838
  %v985 = vunpack.c.l.b16 %v839
  %v986 = vunpack.c.l.b16 %v840
  %v987 = vunpack.c.l.b16 %v841
  %v988 = vunpack.c.l.b16 %v842
  %v989 = vunpack.c.l.b16 %v843
  %v990 = vunpack.c.l.b16 %v844
  %v991 = vunpack.c.l.b16 %v845
  %v992 = vunpack.c.l.b16 %v846
  %v993 = vpack.c.b16 %v978, %v977
  %v994 = vpack.c.b16 %v980, %v979
  %v995 = vpack.c.b16 %v982, %v981
  %v996 = vpack.c.b16 %v984, %v983
  %v997 = vpack.c.b16 %v986, %v985
  %v998 = vpack.c.b16 %v988, %v987
  %v999 = vpack.c.b16 %v990, %v989
  %v1000 = vpack.c.b16 %v992, %v991
  %1009 = vmatprep.subr.bf16.mxu0 0
  %1010 = vmatpush1.bf16.msra.mxu0 %v993
  %1011 = vmatprep.subr.bf16.mxu0 0
  %1012 = vmatpush1.bf16.msra.mxu0 %v994
  %1013 = vmatprep.subr.bf16.mxu0 0
  %1014 = vmatpush1.bf16.msra.mxu0 %v995
  %1015 = vmatprep.subr.bf16.mxu0 0
  %1016 = vmatpush1.bf16.msra.mxu0 %v996
  %1017 = vmatprep.subr.bf16.mxu0 0
  %1018 = vmatpush1.bf16.msra.mxu0 %v997
  %1019 = vmatprep.subr.bf16.mxu0 0
  %1020 = vmatpush1.bf16.msra.mxu0 %v998
  %1021 = vmatprep.subr.bf16.mxu0 0
  %1022 = vmatpush1.bf16.msra.mxu0 %v999
  %1023 = vmatprep.subr.bf16.mxu0 0
  %1024 = vmatpush1.bf16.msra.mxu0 %v1000
  %1025 = vmatprep.subr.bf16.mxu0 0
  %1026 = vmatpush1.bf16.msra.mxu0 0
  %1027 = vmatprep.subr.bf16.mxu0 0
  %1028 = vmatpush1.bf16.msra.mxu0 0
  %1029 = vmatprep.subr.bf16.mxu0 0
  %1030 = vmatpush1.bf16.msra.mxu0 0
  %1031 = vmatprep.subr.bf16.mxu0 0
  %1032 = vmatpush1.bf16.msra.mxu0 0
  %1033 = vmatprep.subr.bf16.mxu0 0
  %1034 = vmatpush1.bf16.msra.mxu0 0
  %1035 = vmatprep.subr.bf16.mxu0 0
  %1036 = vmatpush1.bf16.msra.mxu0 0
  %1037 = vmatprep.subr.bf16.mxu0 0
  %1038 = vmatpush1.bf16.msra.mxu0 0
  %1039 = vmatprep.subr.bf16.mxu0 0
  %1040 = vmatpush1.bf16.msra.mxu0 0
  %1041 = vmatprep.mubr.bf16.mxu0 0
  %1042 = vmatmul.mubr.bf16.gmra.mrb[0].mxu0 %v829
  %v1043 = vpop.f32.mrb[0].mxu0
  %v1044 = vadd.f32 %v947, %v1043
  %v1045 = vpop.f32.mrb[0].mxu0
  %v1046 = vpop.f32.mrb[0].mxu0
  %v1047 = vadd.f32 %v950, %v1046
  %v1048 = vpop.f32.mrb[0].mxu0
  %1049 = vmatprep.mubr.bf16.mxu0 0
  %1050 = vmatmul.mubr.bf16.gmra.mrb[0].mxu0 %v830
  %v1051 = vpop.f32.mrb[0].mxu0
  %v1052 = vadd.f32 %v955, %v1051
  %v1053 = vpop.f32.mrb[0].mxu0
  %v1054 = vpop.f32.mrb[0].mxu0
  %v1055 = vadd.f32 %v958, %v1054
  %v1056 = vpop.f32.mrb[0].mxu0
  %1057 = vdwg.mxu0
  %v1058 = vld [vmem:[%s9] sm:$0x1]
  %v1060 = vlaneseq
  %v1061 = vshrl.u32 %v1060, 7
  %v1062 = vsub.s32 0, %v1061
  %v1063 = vrot.slane %v1058, %v1062
  %v1065 = vadd.f32 %v1044, %v1063
  %v1066 = vadd.f32 %v1047, %v1063
  %v1067 = vadd.f32 %v1052, %v1063
  %v1068 = vadd.f32 %v1055, %v1063
  %v1069 = vmax.f32 %v1065, 0.0
  %v1070 = vmax.f32 %v1066, 0.0
  %v1071 = vmax.f32 %v1067, 0.0
  %v1072 = vmax.f32 %v1068, 0.0
  %v1073 = vpack.c.bf16 %v1070, %v1069
  %v1074 = vpack.c.bf16 %v1072, %v1071
  %1075 = vmatprep.subr.bf16.mxu0 0
  %1076 = vmatpush1.bf16.msra.mxu0 %v1073
  %1077 = vmatprep.subr.bf16.mxu0 0
  %1078 = vmatpush1.bf16.msra.mxu0 %v1074
  %1079 = vmatprep.subr.bf16.mxu0 0
  %1080 = vmatpush1.bf16.msra.mxu0 0
  %1081 = vmatprep.subr.bf16.mxu0 0
  %1082 = vmatpush1.bf16.msra.mxu0 0
  %1083 = vmatprep.subr.bf16.mxu0 0
  %1084 = vmatpush1.bf16.msra.mxu0 0
  %1085 = vmatprep.subr.bf16.mxu0 0
  %1086 = vmatpush1.bf16.msra.mxu0 0
  %1087 = vmatprep.subr.bf16.mxu0 0
  %1088 = vmatpush1.bf16.msra.mxu0 0
  %1089 = vmatprep.subr.bf16.mxu0 0
  %1090 = vmatpush1.bf16.msra.mxu0 0
  %1091 = vmatprep.subr.bf16.mxu0 0
  %1092 = vmatpush1.bf16.msra.mxu0 0
  %1093 = vmatprep.subr.bf16.mxu0 0
  %1094 = vmatpush1.bf16.msra.mxu0 0
  %1095 = vmatprep.subr.bf16.mxu0 0
  %1096 = vmatpush1.bf16.msra.mxu0 0
  %1097 = vmatprep.subr.bf16.mxu0 0
  %1098 = vmatpush1.bf16.msra.mxu0 0
  %1099 = vmatprep.subr.bf16.mxu0 0
  %1100 = vmatpush1.bf16.msra.mxu0 0
  %1101 = vmatprep.subr.bf16.mxu0 0
  %1102 = vmatpush1.bf16.msra.mxu0 0
  %1103 = vmatprep.subr.bf16.mxu0 0
  %1104 = vmatpush1.bf16.msra.mxu0 0
  %1105 = vmatprep.subr.bf16.mxu0 0
  %1106 = vmatpush1.bf16.msra.mxu0 0
  %1107 = vmatprep.mubr.bf16.mxu0 0
  %1108 = vmatmul.mubr.bf16.gmra.mrb[0].mxu0 %v775
  %v1109 = vpop.f32.mrb[0].mxu0
  %v1110 = vadd.f32 0.0, %v1109
  %v1111 = vpop.f32.mrb[0].mxu0
  %v1112 = vpop.f32.mrb[0].mxu0
  %v1113 = vadd.f32 0.0, %v1112
  %v1114 = vpop.f32.mrb[0].mxu0
  %1115 = vmatprep.mubr.bf16.mxu0 0
  %1116 = vmatmul.mubr.bf16.gmra.mrb[0].mxu0 %v778
  %v1117 = vpop.f32.mrb[0].mxu0
  %v1118 = vadd.f32 0.0, %v1117
  %v1119 = vpop.f32.mrb[0].mxu0
  %v1120 = vpop.f32.mrb[0].mxu0
  %v1121 = vadd.f32 0.0, %v1120
  %v1122 = vpop.f32.mrb[0].mxu0
  %1123 = vdwg.mxu0
  %v1124 = vpack.c.bf16 %v1113, %v1110
  %v1125 = vpack.c.bf16 %v1121, %v1118
  %v1126 = vld [vmem:[%s10] sm:$0xf]
  %v1127 = vld [vmem:[%s10 + $0x4] sm:$0xf]
  %v1128 = vld [vmem:[%s10 + $0x8] sm:$0xf]
  %v1129 = vld [vmem:[%s10 + $0xc] sm:$0xf]
  %v1130 = vld [vmem:[%s10 + $0x10] sm:$0xf]
  %v1131 = vld [vmem:[%s10 + $0x14] sm:$0xf]
  %v1132 = vld [vmem:[%s10 + $0x18] sm:$0xf]
  %v1133 = vld [vmem:[%s10 + $0x1c] sm:$0xf]
  %v1134 = vld [vmem:[%s10 + $0x20] sm:$0xf]
  %v1135 = vld [vmem:[%s10 + $0x24] sm:$0xf]
  %v1136 = vld [vmem:[%s10 + $0x28] sm:$0xf]
  %v1137 = vld [vmem:[%s10 + $0x2c] sm:$0xf]
  %v1138 = vld [vmem:[%s10 + $0x30] sm:$0xf]
  %v1139 = vld [vmem:[%s10 + $0x34] sm:$0xf]
  %v1140 = vld [vmem:[%s10 + $0x38] sm:$0xf]
  %v1141 = vld [vmem:[%s10 + $0x3c] sm:$0xf]
  %s1142 = scalar_lea.vmem %s10, 64
  %v1143 = vld [vmem:[%s1142] sm:$0xf]
  %v1144 = vld [vmem:[%s1142 + $0x4] sm:$0xf]
  %v1145 = vld [vmem:[%s1142 + $0x8] sm:$0xf]
  %v1146 = vld [vmem:[%s1142 + $0xc] sm:$0xf]
  %v1147 = vld [vmem:[%s1142 + $0x10] sm:$0xf]
  %v1148 = vld [vmem:[%s1142 + $0x14] sm:$0xf]
  %v1149 = vld [vmem:[%s1142 + $0x18] sm:$0xf]
  %v1150 = vld [vmem:[%s1142 + $0x1c] sm:$0xf]
  %v1151 = vld [vmem:[%s1142 + $0x20] sm:$0xf]
  %v1152 = vld [vmem:[%s1142 + $0x24] sm:$0xf]
  %v1153 = vld [vmem:[%s1142 + $0x28] sm:$0xf]
  %v1154 = vld [vmem:[%s1142 + $0x2c] sm:$0xf]
  %v1155 = vld [vmem:[%s1142 + $0x30] sm:$0xf]
  %v1156 = vld [vmem:[%s1142 + $0x34] sm:$0xf]
  %v1157 = vld [vmem:[%s1142 + $0x38] sm:$0xf]
  %v1158 = vld [vmem:[%s1142 + $0x3c] sm:$0xf]
  %v1175 = vunpack.c.l.b16 %v1143
  %v1176 = vunpack.c.l.b16 %v1144
  %v1177 = vunpack.c.l.b16 %v1145
  %v1178 = vunpack.c.l.b16 %v1146
  %v1179 = vunpack.c.l.b16 %v1147
  %v1180 = vunpack.c.l.b16 %v1148
  %v1181 = vunpack.c.l.b16 %v1149
  %v1182 = vunpack.c.l.b16 %v1150
  %v1183 = vunpack.c.l.b16 %v1151
  %v1184 = vunpack.c.l.b16 %v1152
  %v1185 = vunpack.c.l.b16 %v1153
  %v1186 = vunpack.c.l.b16 %v1154
  %v1187 = vunpack.c.l.b16 %v1155
  %v1188 = vunpack.c.l.b16 %v1156
  %v1189 = vunpack.c.l.b16 %v1157
  %v1190 = vunpack.c.l.b16 %v1158
  %v1191 = vpack.c.b16 %v1176, %v1175
  %v1192 = vpack.c.b16 %v1178, %v1177
  %v1193 = vpack.c.b16 %v1180, %v1179
  %v1194 = vpack.c.b16 %v1182, %v1181
  %v1195 = vpack.c.b16 %v1184, %v1183
  %v1196 = vpack.c.b16 %v1186, %v1185
  %v1197 = vpack.c.b16 %v1188, %v1187
  %v1198 = vpack.c.b16 %v1190, %v1189
  %1207 = vmatprep.subr.bf16.mxu0 0
  %1208 = vmatpush1.bf16.msra.mxu0 %v1191
  %1209 = vmatprep.subr.bf16.mxu0 0
  %1210 = vmatpush1.bf16.msra.mxu0 %v1192
  %1211 = vmatprep.subr.bf16.mxu0 0
  %1212 = vmatpush1.bf16.msra.mxu0 %v1193
  %1213 = vmatprep.subr.bf16.mxu0 0
  %1214 = vmatpush1.bf16.msra.mxu0 %v1194
  %1215 = vmatprep.subr.bf16.mxu0 0
  %1216 = vmatpush1.bf16.msra.mxu0 %v1195
  %1217 = vmatprep.subr.bf16.mxu0 0
  %1218 = vmatpush1.bf16.msra.mxu0 %v1196
  %1219 = vmatprep.subr.bf16.mxu0 0
  %1220 = vmatpush1.bf16.msra.mxu0 %v1197
  %1221 = vmatprep.subr.bf16.mxu0 0
  %1222 = vmatpush1.bf16.msra.mxu0 %v1198
  %1223 = vmatprep.subr.bf16.mxu0 0
  %1224 = vmatpush1.bf16.msra.mxu0 0
  %1225 = vmatprep.subr.bf16.mxu0 0
  %1226 = vmatpush1.bf16.msra.mxu0 0
  %1227 = vmatprep.subr.bf16.mxu0 0
  %1228 = vmatpush1.bf16.msra.mxu0 0
  %1229 = vmatprep.subr.bf16.mxu0 0
  %1230 = vmatpush1.bf16.msra.mxu0 0
  %1231 = vmatprep.subr.bf16.mxu0 0
  %1232 = vmatpush1.bf16.msra.mxu0 0
  %1233 = vmatprep.subr.bf16.mxu0 0
  %1234 = vmatpush1.bf16.msra.mxu0 0
  %1235 = vmatprep.subr.bf16.mxu0 0
  %1236 = vmatpush1.bf16.msra.mxu0 0
  %1237 = vmatprep.subr.bf16.mxu0 0
  %1238 = vmatpush1.bf16.msra.mxu0 0
  %1239 = vmatprep.mubr.bf16.mxu0 0
  %1240 = vmatmul.mubr.bf16.gmra.mrb[0].mxu0 %v1073
  %v1241 = vpop.f32.mrb[0].mxu0
  %v1242 = vadd.f32 0.0, %v1241
  %v1243 = vpop.f32.mrb[0].mxu0
  %v1244 = vpop.f32.mrb[0].mxu0
  %v1245 = vadd.f32 0.0, %v1244
  %v1246 = vpop.f32.mrb[0].mxu0
  %1247 = vmatprep.mubr.bf16.mxu0 0
  %1248 = vmatmul.mubr.bf16.gmra.mrb[0].mxu0 %v1074
  %v1249 = vpop.f32.mrb[0].mxu0
  %v1250 = vadd.f32 0.0, %v1249
  %v1251 = vpop.f32.mrb[0].mxu0
  %v1252 = vpop.f32.mrb[0].mxu0
  %v1253 = vadd.f32 0.0, %v1252
  %v1254 = vpop.f32.mrb[0].mxu0
  %1255 = vdwg.mxu0
  %v1272 = vunpack.c.l.b16 %v1126
  %v1273 = vunpack.c.l.b16 %v1127
  %v1274 = vunpack.c.l.b16 %v1128
  %v1275 = vunpack.c.l.b16 %v1129
  %v1276 = vunpack.c.l.b16 %v1130
  %v1277 = vunpack.c.l.b16 %v1131
  %v1278 = vunpack.c.l.b16 %v1132
  %v1279 = vunpack.c.l.b16 %v1133
  %v1280 = vunpack.c.l.b16 %v1134
  %v1281 = vunpack.c.l.b16 %v1135
  %v1282 = vunpack.c.l.b16 %v1136
  %v1283 = vunpack.c.l.b16 %v1137
  %v1284 = vunpack.c.l.b16 %v1138
  %v1285 = vunpack.c.l.b16 %v1139
  %v1286 = vunpack.c.l.b16 %v1140
  %v1287 = vunpack.c.l.b16 %v1141
  %v1288 = vpack.c.b16 %v1273, %v1272
  %v1289 = vpack.c.b16 %v1275, %v1274
  %v1290 = vpack.c.b16 %v1277, %v1276
  %v1291 = vpack.c.b16 %v1279, %v1278
  %v1292 = vpack.c.b16 %v1281, %v1280
  %v1293 = vpack.c.b16 %v1283, %v1282
  %v1294 = vpack.c.b16 %v1285, %v1284
  %v1295 = vpack.c.b16 %v1287, %v1286
  %1304 = vmatprep.subr.bf16.mxu0 0
  %1305 = vmatpush1.bf16.msra.mxu0 %v1288
  %1306 = vmatprep.subr.bf16.mxu0 0
  %1307 = vmatpush1.bf16.msra.mxu0 %v1289
  %1308 = vmatprep.subr.bf16.mxu0 0
  %1309 = vmatpush1.bf16.msra.mxu0 %v1290
  %1310 = vmatprep.subr.bf16.mxu0 0
  %1311 = vmatpush1.bf16.msra.mxu0 %v1291
  %1312 = vmatprep.subr.bf16.mxu0 0
  %1313 = vmatpush1.bf16.msra.mxu0 %v1292
  %1314 = vmatprep.subr.bf16.mxu0 0
  %1315 = vmatpush1.bf16.msra.mxu0 %v1293
  %1316 = vmatprep.subr.bf16.mxu0 0
  %1317 = vmatpush1.bf16.msra.mxu0 %v1294
  %1318 = vmatprep.subr.bf16.mxu0 0
  %1319 = vmatpush1.bf16.msra.mxu0 %v1295
  %1320 = vmatprep.subr.bf16.mxu0 0
  %1321 = vmatpush1.bf16.msra.mxu0 0
  %1322 = vmatprep.subr.bf16.mxu0 0
  %1323 = vmatpush1.bf16.msra.mxu0 0
  %1324 = vmatprep.subr.bf16.mxu0 0
  %1325 = vmatpush1.bf16.msra.mxu0 0
  %1326 = vmatprep.subr.bf16.mxu0 0
  %1327 = vmatpush1.bf16.msra.mxu0 0
  %1328 = vmatprep.subr.bf16.mxu0 0
  %1329 = vmatpush1.bf16.msra.mxu0 0
  %1330 = vmatprep.subr.bf16.mxu0 0
  %1331 = vmatpush1.bf16.msra.mxu0 0
  %1332 = vmatprep.subr.bf16.mxu0 0
  %1333 = vmatpush1.bf16.msra.mxu0 0
  %1334 = vmatprep.subr.bf16.mxu0 0
  %1335 = vmatpush1.bf16.msra.mxu0 0
  %1336 = vmatprep.mubr.bf16.mxu0 0
  %1337 = vmatmul.mubr.bf16.gmra.mrb[0].mxu0 %v1124
  %v1338 = vpop.f32.mrb[0].mxu0
  %v1339 = vadd.f32 %v1242, %v1338
  %v1340 = vpop.f32.mrb[0].mxu0
  %v1341 = vpop.f32.mrb[0].mxu0
  %v1342 = vadd.f32 %v1245, %v1341
  %v1343 = vpop.f32.mrb[0].mxu0
  %1344 = vmatprep.mubr.bf16.mxu0 0
  %1345 = vmatmul.mubr.bf16.gmra.mrb[0].mxu0 %v1125
  %v1346 = vpop.f32.mrb[0].mxu0
  %v1347 = vadd.f32 %v1250, %v1346
  %v1348 = vpop.f32.mrb[0].mxu0
  %v1349 = vpop.f32.mrb[0].mxu0
  %v1350 = vadd.f32 %v1253, %v1349
  %v1351 = vpop.f32.mrb[0].mxu0
  %1352 = vdwg.mxu0
  %v1353 = vld [vmem:[%s11] sm:$0x1]
  %v1355 = vlaneseq
  %v1356 = vshrl.u32 %v1355, 7
  %v1357 = vsub.s32 0, %v1356
  %v1358 = vrot.slane %v1353, %v1357
  %v1360 = vadd.f32 %v1339, %v1358
  %v1361 = vadd.f32 %v1342, %v1358
  %v1362 = vadd.f32 %v1347, %v1358
  %v1363 = vadd.f32 %v1350, %v1358
  %v1364 = vmax.f32 %v1360, 0.0
  %v1365 = vmax.f32 %v1361, 0.0
  %v1366 = vmax.f32 %v1362, 0.0
  %v1367 = vmax.f32 %v1363, 0.0
  %v1368 = vadd.f32 %v1364, %v754
  %v1369 = vadd.f32 %v1365, %v755
  %v1370 = vadd.f32 %v1366, %v756
  %v1371 = vadd.f32 %v1367, %v757
  %v1372 = vmax.f32 %v1368, 0.0
  %v1373 = vmax.f32 %v1369, 0.0
  %v1374 = vmax.f32 %v1370, 0.0
  %v1375 = vmax.f32 %v1371, 0.0
  %v1376 = vpack.c.bf16 %v1373, %v1372
  %v1377 = vpack.c.bf16 %v1375, %v1374
  %v1378 = vld [vmem:[%s3] sm:$0xf]
  %v1379 = vld [vmem:[%s3 + $0x4] sm:$0xf]
  %v1380 = vld [vmem:[%s3 + $0x8] sm:$0xf]
  %v1381 = vld [vmem:[%s3 + $0xc] sm:$0xf]
  %v1386 = vunpack.c.l.b16 %v1378
  %v1387 = vunpack.c.l.b16 %v1379
  %v1388 = vunpack.c.l.b16 %v1380
  %v1389 = vunpack.c.l.b16 %v1381
  %v1390 = vpack.c.b16 %v1387, %v1386
  %v1391 = vpack.c.b16 %v1389, %v1388
  %v1393 = vsel %vm74, %v1390, 0
  %v1396 = vsel %vm74, %v1391, 0
  %1398 = vmatprep.subr.bf16.mxu0 0
  %1399 = vmatpush1.bf16.msra.mxu0 %v1376
  %1400 = vmatprep.subr.bf16.mxu0 0
  %1401 = vmatpush1.bf16.msra.mxu0 %v1377
  %1402 = vmatprep.subr.bf16.mxu0 0
  %1403 = vmatpush1.bf16.msra.mxu0 0
  %1404 = vmatprep.subr.bf16.mxu0 0
  %1405 = vmatpush1.bf16.msra.mxu0 0
  %1406 = vmatprep.subr.bf16.mxu0 0
  %1407 = vmatpush1.bf16.msra.mxu0 0
  %1408 = vmatprep.subr.bf16.mxu0 0
  %1409 = vmatpush1.bf16.msra.mxu0 0
  %1410 = vmatprep.subr.bf16.mxu0 0
  %1411 = vmatpush1.bf16.msra.mxu0 0
  %1412 = vmatprep.subr.bf16.mxu0 0
  %1413 = vmatpush1.bf16.msra.mxu0 0
  %1414 = vmatprep.subr.bf16.mxu0 0
  %1415 = vmatpush1.bf16.msra.mxu0 0
  %1416 = vmatprep.subr.bf16.mxu0 0
  %1417 = vmatpush1.bf16.msra.mxu0 0
  %1418 = vmatprep.subr.bf16.mxu0 0
  %1419 = vmatpush1.bf16.msra.mxu0 0
  %1420 = vmatprep.subr.bf16.mxu0 0
  %1421 = vmatpush1.bf16.msra.mxu0 0
  %1422 = vmatprep.subr.bf16.mxu0 0
  %1423 = vmatpush1.bf16.msra.mxu0 0
  %1424 = vmatprep.subr.bf16.mxu0 0
  %1425 = vmatpush1.bf16.msra.mxu0 0
  %1426 = vmatprep.subr.bf16.mxu0 0
  %1427 = vmatpush1.bf16.msra.mxu0 0
  %1428 = vmatprep.subr.bf16.mxu0 0
  %1429 = vmatpush1.bf16.msra.mxu0 0
  %1430 = vmatprep.mubr.bf16.mxu0 0
  %1431 = vmatmul.mubr.bf16.gmra.mrb[0].mxu0 %v1393
  %v1432 = vpop.f32.mrb[0].mxu0
  %v1433 = vadd.f32 0.0, %v1432
  %v1434 = vpop.f32.mrb[0].mxu0
  %v1435 = vpop.f32.mrb[0].mxu0
  %v1436 = vadd.f32 0.0, %v1435
  %v1437 = vpop.f32.mrb[0].mxu0
  %1438 = vmatprep.mubr.bf16.mxu0 0
  %1439 = vmatmul.mubr.bf16.gmra.mrb[0].mxu0 %v1396
  %v1440 = vpop.f32.mrb[0].mxu0
  %v1441 = vadd.f32 0.0, %v1440
  %v1442 = vpop.f32.mrb[0].mxu0
  %v1443 = vpop.f32.mrb[0].mxu0
  %v1444 = vadd.f32 0.0, %v1443
  %v1445 = vpop.f32.mrb[0].mxu0
  %1446 = vdwg.mxu0
  %v1447 = vpack.c.bf16 %v1436, %v1433
  %v1448 = vpack.c.bf16 %v1444, %v1441
  %v1449 = vld [vmem:[%s12] sm:$0xf]
  %v1450 = vld [vmem:[%s12 + $0x4] sm:$0xf]
  %v1451 = vld [vmem:[%s12 + $0x8] sm:$0xf]
  %v1452 = vld [vmem:[%s12 + $0xc] sm:$0xf]
  %v1453 = vld [vmem:[%s12 + $0x10] sm:$0xf]
  %v1454 = vld [vmem:[%s12 + $0x14] sm:$0xf]
  %v1455 = vld [vmem:[%s12 + $0x18] sm:$0xf]
  %v1456 = vld [vmem:[%s12 + $0x1c] sm:$0xf]
  %v1457 = vld [vmem:[%s12 + $0x20] sm:$0xf]
  %v1458 = vld [vmem:[%s12 + $0x24] sm:$0xf]
  %v1459 = vld [vmem:[%s12 + $0x28] sm:$0xf]
  %v1460 = vld [vmem:[%s12 + $0x2c] sm:$0xf]
  %v1461 = vld [vmem:[%s12 + $0x30] sm:$0xf]
  %v1462 = vld [vmem:[%s12 + $0x34] sm:$0xf]
  %v1463 = vld [vmem:[%s12 + $0x38] sm:$0xf]
  %v1464 = vld [vmem:[%s12 + $0x3c] sm:$0xf]
  %s1465 = scalar_lea.vmem %s12, 64
  %v1466 = vld [vmem:[%s1465] sm:$0xf]
  %v1467 = vld [vmem:[%s1465 + $0x4] sm:$0xf]
  %v1468 = vld [vmem:[%s1465 + $0x8] sm:$0xf]
  %v1469 = vld [vmem:[%s1465 + $0xc] sm:$0xf]
  %v1470 = vld [vmem:[%s1465 + $0x10] sm:$0xf]
  %v1471 = vld [vmem:[%s1465 + $0x14] sm:$0xf]
  %v1472 = vld [vmem:[%s1465 + $0x18] sm:$0xf]
  %v1473 = vld [vmem:[%s1465 + $0x1c] sm:$0xf]
  %v1474 = vld [vmem:[%s1465 + $0x20] sm:$0xf]
  %v1475 = vld [vmem:[%s1465 + $0x24] sm:$0xf]
  %v1476 = vld [vmem:[%s1465 + $0x28] sm:$0xf]
  %v1477 = vld [vmem:[%s1465 + $0x2c] sm:$0xf]
  %v1478 = vld [vmem:[%s1465 + $0x30] sm:$0xf]
  %v1479 = vld [vmem:[%s1465 + $0x34] sm:$0xf]
  %v1480 = vld [vmem:[%s1465 + $0x38] sm:$0xf]
  %v1481 = vld [vmem:[%s1465 + $0x3c] sm:$0xf]
  %v1498 = vunpack.c.l.b16 %v1466
  %v1499 = vunpack.c.l.b16 %v1467
  %v1500 = vunpack.c.l.b16 %v1468
  %v1501 = vunpack.c.l.b16 %v1469
  %v1502 = vunpack.c.l.b16 %v1470
  %v1503 = vunpack.c.l.b16 %v1471
  %v1504 = vunpack.c.l.b16 %v1472
  %v1505 = vunpack.c.l.b16 %v1473
  %v1506 = vunpack.c.l.b16 %v1474
  %v1507 = vunpack.c.l.b16 %v1475
  %v1508 = vunpack.c.l.b16 %v1476
  %v1509 = vunpack.c.l.b16 %v1477
  %v1510 = vunpack.c.l.b16 %v1478
  %v1511 = vunpack.c.l.b16 %v1479
  %v1512 = vunpack.c.l.b16 %v1480
  %v1513 = vunpack.c.l.b16 %v1481
  %v1514 = vpack.c.b16 %v1499, %v1498
  %v1515 = vpack.c.b16 %v1501, %v1500
  %v1516 = vpack.c.b16 %v1503, %v1502
  %v1517 = vpack.c.b16 %v1505, %v1504
  %v1518 = vpack.c.b16 %v1507, %v1506
  %v1519 = vpack.c.b16 %v1509, %v1508
  %v1520 = vpack.c.b16 %v1511, %v1510
  %v1521 = vpack.c.b16 %v1513, %v1512
  %1530 = vmatprep.subr.bf16.mxu0 0
  %1531 = vmatpush1.bf16.msra.mxu0 %v1514
  %1532 = vmatprep.subr.bf16.mxu0 0
  %1533 = vmatpush1.bf16.msra.mxu0 %v1515
  %1534 = vmatprep.subr.bf16.mxu0 0
  %1535 = vmatpush1.bf16.msra.mxu0 %v1516
  %1536 = vmatprep.subr.bf16.mxu0 0
  %1537 = vmatpush1.bf16.msra.mxu0 %v1517
  %1538 = vmatprep.subr.bf16.mxu0 0
  %1539 = vmatpush1.bf16.msra.mxu0 %v1518
  %1540 = vmatprep.subr.bf16.mxu0 0
  %1541 = vmatpush1.bf16.msra.mxu0 %v1519
  %1542 = vmatprep.subr.bf16.mxu0 0
  %1543 = vmatpush1.bf16.msra.mxu0 %v1520
  %1544 = vmatprep.subr.bf16.mxu0 0
  %1545 = vmatpush1.bf16.msra.mxu0 %v1521
  %1546 = vmatprep.subr.bf16.mxu0 0
  %1547 = vmatpush1.bf16.msra.mxu0 0
  %1548 = vmatprep.subr.bf16.mxu0 0
  %1549 = vmatpush1.bf16.msra.mxu0 0
  %1550 = vmatprep.subr.bf16.mxu0 0
  %1551 = vmatpush1.bf16.msra.mxu0 0
  %1552 = vmatprep.subr.bf16.mxu0 0
  %1553 = vmatpush1.bf16.msra.mxu0 0
  %1554 = vmatprep.subr.bf16.mxu0 0
  %1555 = vmatpush1.bf16.msra.mxu0 0
  %1556 = vmatprep.subr.bf16.mxu0 0
  %1557 = vmatpush1.bf16.msra.mxu0 0
  %1558 = vmatprep.subr.bf16.mxu0 0
  %1559 = vmatpush1.bf16.msra.mxu0 0
  %1560 = vmatprep.subr.bf16.mxu0 0
  %1561 = vmatpush1.bf16.msra.mxu0 0
  %1562 = vmatprep.mubr.bf16.mxu0 0
  %1563 = vmatmul.mubr.bf16.gmra.mrb[0].mxu0 %v1376
  %v1564 = vpop.f32.mrb[0].mxu0
  %v1565 = vadd.f32 0.0, %v1564
  %v1566 = vpop.f32.mrb[0].mxu0
  %v1567 = vpop.f32.mrb[0].mxu0
  %v1568 = vadd.f32 0.0, %v1567
  %v1569 = vpop.f32.mrb[0].mxu0
  %1570 = vmatprep.mubr.bf16.mxu0 0
  %1571 = vmatmul.mubr.bf16.gmra.mrb[0].mxu0 %v1377
  %v1572 = vpop.f32.mrb[0].mxu0
  %v1573 = vadd.f32 0.0, %v1572
  %v1574 = vpop.f32.mrb[0].mxu0
  %v1575 = vpop.f32.mrb[0].mxu0
  %v1576 = vadd.f32 0.0, %v1575
  %v1577 = vpop.f32.mrb[0].mxu0
  %1578 = vdwg.mxu0
  %v1595 = vunpack.c.l.b16 %v1449
  %v1596 = vunpack.c.l.b16 %v1450
  %v1597 = vunpack.c.l.b16 %v1451
  %v1598 = vunpack.c.l.b16 %v1452
  %v1599 = vunpack.c.l.b16 %v1453
  %v1600 = vunpack.c.l.b16 %v1454
  %v1601 = vunpack.c.l.b16 %v1455
  %v1602 = vunpack.c.l.b16 %v1456
  %v1603 = vunpack.c.l.b16 %v1457
  %v1604 = vunpack.c.l.b16 %v1458
  %v1605 = vunpack.c.l.b16 %v1459
  %v1606 = vunpack.c.l.b16 %v1460
  %v1607 = vunpack.c.l.b16 %v1461
  %v1608 = vunpack.c.l.b16 %v1462
  %v1609 = vunpack.c.l.b16 %v1463
  %v1610 = vunpack.c.l.b16 %v1464
  %v1611 = vpack.c.b16 %v1596, %v1595
  %v1612 = vpack.c.b16 %v1598, %v1597
  %v1613 = vpack.c.b16 %v1600, %v1599
  %v1614 = vpack.c.b16 %v1602, %v1601
  %v1615 = vpack.c.b16 %v1604, %v1603
  %v1616 = vpack.c.b16 %v1606, %v1605
  %v1617 = vpack.c.b16 %v1608, %v1607
  %v1618 = vpack.c.b16 %v1610, %v1609
  %1627 = vmatprep.subr.bf16.mxu0 0
  %1628 = vmatpush1.bf16.msra.mxu0 %v1611
  %1629 = vmatprep.subr.bf16.mxu0 0
  %1630 = vmatpush1.bf16.msra.mxu0 %v1612
  %1631 = vmatprep.subr.bf16.mxu0 0
  %1632 = vmatpush1.bf16.msra.mxu0 %v1613
  %1633 = vmatprep.subr.bf16.mxu0 0
  %1634 = vmatpush1.bf16.msra.mxu0 %v1614
  %1635 = vmatprep.subr.bf16.mxu0 0
  %1636 = vmatpush1.bf16.msra.mxu0 %v1615
  %1637 = vmatprep.subr.bf16.mxu0 0
  %1638 = vmatpush1.bf16.msra.mxu0 %v1616
  %1639 = vmatprep.subr.bf16.mxu0 0
  %1640 = vmatpush1.bf16.msra.mxu0 %v1617
  %1641 = vmatprep.subr.bf16.mxu0 0
  %1642 = vmatpush1.bf16.msra.mxu0 %v1618
  %1643 = vmatprep.subr.bf16.mxu0 0
  %1644 = vmatpush1.bf16.msra.mxu0 0
  %1645 = vmatprep.subr.bf16.mxu0 0
  %1646 = vmatpush1.bf16.msra.mxu0 0
  %1647 = vmatprep.subr.bf16.mxu0 0
  %1648 = vmatpush1.bf16.msra.mxu0 0
  %1649 = vmatprep.subr.bf16.mxu0 0
  %1650 = vmatpush1.bf16.msra.mxu0 0
  %1651 = vmatprep.subr.bf16.mxu0 0
  %1652 = vmatpush1.bf16.msra.mxu0 0
  %1653 = vmatprep.subr.bf16.mxu0 0
  %1654 = vmatpush1.bf16.msra.mxu0 0
  %1655 = vmatprep.subr.bf16.mxu0 0
  %1656 = vmatpush1.bf16.msra.mxu0 0
  %1657 = vmatprep.subr.bf16.mxu0 0
  %1658 = vmatpush1.bf16.msra.mxu0 0
  %1659 = vmatprep.mubr.bf16.mxu0 0
  %1660 = vmatmul.mubr.bf16.gmra.mrb[0].mxu0 %v1447
  %v1661 = vpop.f32.mrb[0].mxu0
  %v1662 = vadd.f32 %v1565, %v1661
  %v1663 = vpop.f32.mrb[0].mxu0
  %v1664 = vpop.f32.mrb[0].mxu0
  %v1665 = vadd.f32 %v1568, %v1664
  %v1666 = vpop.f32.mrb[0].mxu0
  %1667 = vmatprep.mubr.bf16.mxu0 0
  %1668 = vmatmul.mubr.bf16.gmra.mrb[0].mxu0 %v1448
  %v1669 = vpop.f32.mrb[0].mxu0
  %v1670 = vadd.f32 %v1573, %v1669
  %v1671 = vpop.f32.mrb[0].mxu0
  %v1672 = vpop.f32.mrb[0].mxu0
  %v1673 = vadd.f32 %v1576, %v1672
  %v1674 = vpop.f32.mrb[0].mxu0
  %1675 = vdwg.mxu0
  %v1676 = vld [vmem:[%s13] sm:$0x1]
  %v1678 = vlaneseq
  %v1679 = vshrl.u32 %v1678, 7
  %v1680 = vsub.s32 0, %v1679
  %v1681 = vrot.slane %v1676, %v1680
  %v1683 = vadd.f32 %v1662, %v1681
  %v1684 = vadd.f32 %v1665, %v1681
  %v1685 = vadd.f32 %v1670, %v1681
  %v1686 = vadd.f32 %v1673, %v1681
  %v1687 = vmax.f32 %v1683, 0.0
  %v1688 = vmax.f32 %v1684, 0.0
  %v1689 = vmax.f32 %v1685, 0.0
  %v1690 = vmax.f32 %v1686, 0.0
  %v1691 = vpack.c.bf16 %v1688, %v1687
  %v1692 = vpack.c.bf16 %v1690, %v1689
  %1693 = vmatprep.subr.bf16.mxu0 0
  %1694 = vmatpush1.bf16.msra.mxu0 %v1691
  %1695 = vmatprep.subr.bf16.mxu0 0
  %1696 = vmatpush1.bf16.msra.mxu0 %v1692
  %1697 = vmatprep.subr.bf16.mxu0 0
  %1698 = vmatpush1.bf16.msra.mxu0 0
  %1699 = vmatprep.subr.bf16.mxu0 0
  %1700 = vmatpush1.bf16.msra.mxu0 0
  %1701 = vmatprep.subr.bf16.mxu0 0
  %1702 = vmatpush1.bf16.msra.mxu0 0
  %1703 = vmatprep.subr.bf16.mxu0 0
  %1704 = vmatpush1.bf16.msra.mxu0 0
  %1705 = vmatprep.subr.bf16.mxu0 0
  %1706 = vmatpush1.bf16.msra.mxu0 0
  %1707 = vmatprep.subr.bf16.mxu0 0
  %1708 = vmatpush1.bf16.msra.mxu0 0
  %1709 = vmatprep.subr.bf16.mxu0 0
  %1710 = vmatpush1.bf16.msra.mxu0 0
  %1711 = vmatprep.subr.bf16.mxu0 0
  %1712 = vmatpush1.bf16.msra.mxu0 0
  %1713 = vmatprep.subr.bf16.mxu0 0
  %1714 = vmatpush1.bf16.msra.mxu0 0
  %1715 = vmatprep.subr.bf16.mxu0 0
  %1716 = vmatpush1.bf16.msra.mxu0 0
  %1717 = vmatprep.subr.bf16.mxu0 0
  %1718 = vmatpush1.bf16.msra.mxu0 0
  %1719 = vmatprep.subr.bf16.mxu0 0
  %1720 = vmatpush1.bf16.msra.mxu0 0
  %1721 = vmatprep.subr.bf16.mxu0 0
  %1722 = vmatpush1.bf16.msra.mxu0 0
  %1723 = vmatprep.subr.bf16.mxu0 0
  %1724 = vmatpush1.bf16.msra.mxu0 0
  %1725 = vmatprep.mubr.bf16.mxu0 0
  %1726 = vmatmul.mubr.bf16.gmra.mrb[0].mxu0 %v1393
  %v1727 = vpop.f32.mrb[0].mxu0
  %v1728 = vadd.f32 0.0, %v1727
  %v1729 = vpop.f32.mrb[0].mxu0
  %v1730 = vpop.f32.mrb[0].mxu0
  %v1731 = vadd.f32 0.0, %v1730
  %v1732 = vpop.f32.mrb[0].mxu0
  %1733 = vmatprep.mubr.bf16.mxu0 0
  %1734 = vmatmul.mubr.bf16.gmra.mrb[0].mxu0 %v1396
  %v1735 = vpop.f32.mrb[0].mxu0
  %v1736 = vadd.f32 0.0, %v1735
  %v1737 = vpop.f32.mrb[0].mxu0
  %v1738 = vpop.f32.mrb[0].mxu0
  %v1739 = vadd.f32 0.0, %v1738
  %v1740 = vpop.f32.mrb[0].mxu0
  %1741 = vdwg.mxu0
  %v1742 = vpack.c.bf16 %v1731, %v1728
  %v1743 = vpack.c.bf16 %v1739, %v1736
  %v1744 = vld [vmem:[%s14] sm:$0xf]
  %v1745 = vld [vmem:[%s14 + $0x4] sm:$0xf]
  %v1746 = vld [vmem:[%s14 + $0x8] sm:$0xf]
  %v1747 = vld [vmem:[%s14 + $0xc] sm:$0xf]
  %v1748 = vld [vmem:[%s14 + $0x10] sm:$0xf]
  %v1749 = vld [vmem:[%s14 + $0x14] sm:$0xf]
  %v1750 = vld [vmem:[%s14 + $0x18] sm:$0xf]
  %v1751 = vld [vmem:[%s14 + $0x1c] sm:$0xf]
  %v1752 = vld [vmem:[%s14 + $0x20] sm:$0xf]
  %v1753 = vld [vmem:[%s14 + $0x24] sm:$0xf]
  %v1754 = vld [vmem:[%s14 + $0x28] sm:$0xf]
  %v1755 = vld [vmem:[%s14 + $0x2c] sm:$0xf]
  %v1756 = vld [vmem:[%s14 + $0x30] sm:$0xf]
  %v1757 = vld [vmem:[%s14 + $0x34] sm:$0xf]
  %v1758 = vld [vmem:[%s14 + $0x38] sm:$0xf]
  %v1759 = vld [vmem:[%s14 + $0x3c] sm:$0xf]
  %s1760 = scalar_lea.vmem %s14, 64
  %v1761 = vld [vmem:[%s1760] sm:$0xf]
  %v1762 = vld [vmem:[%s1760 + $0x4] sm:$0xf]
  %v1763 = vld [vmem:[%s1760 + $0x8] sm:$0xf]
  %v1764 = vld [vmem:[%s1760 + $0xc] sm:$0xf]
  %v1765 = vld [vmem:[%s1760 + $0x10] sm:$0xf]
  %v1766 = vld [vmem:[%s1760 + $0x14] sm:$0xf]
  %v1767 = vld [vmem:[%s1760 + $0x18] sm:$0xf]
  %v1768 = vld [vmem:[%s1760 + $0x1c] sm:$0xf]
  %v1769 = vld [vmem:[%s1760 + $0x20] sm:$0xf]
  %v1770 = vld [vmem:[%s1760 + $0x24] sm:$0xf]
  %v1771 = vld [vmem:[%s1760 + $0x28] sm:$0xf]
  %v1772 = vld [vmem:[%s1760 + $0x2c] sm:$0xf]
  %v1773 = vld [vmem:[%s1760 + $0x30] sm:$0xf]
  %v1774 = vld [vmem:[%s1760 + $0x34] sm:$0xf]
  %v1775 = vld [vmem:[%s1760 + $0x38] sm:$0xf]
  %v1776 = vld [vmem:[%s1760 + $0x3c] sm:$0xf]
  %v1793 = vunpack.c.l.b16 %v1761
  %v1794 = vunpack.c.l.b16 %v1762
  %v1795 = vunpack.c.l.b16 %v1763
  %v1796 = vunpack.c.l.b16 %v1764
  %v1797 = vunpack.c.l.b16 %v1765
  %v1798 = vunpack.c.l.b16 %v1766
  %v1799 = vunpack.c.l.b16 %v1767
  %v1800 = vunpack.c.l.b16 %v1768
  %v1801 = vunpack.c.l.b16 %v1769
  %v1802 = vunpack.c.l.b16 %v1770
  %v1803 = vunpack.c.l.b16 %v1771
  %v1804 = vunpack.c.l.b16 %v1772
  %v1805 = vunpack.c.l.b16 %v1773
  %v1806 = vunpack.c.l.b16 %v1774
  %v1807 = vunpack.c.l.b16 %v1775
  %v1808 = vunpack.c.l.b16 %v1776
  %v1809 = vpack.c.b16 %v1794, %v1793
  %v1810 = vpack.c.b16 %v1796, %v1795
  %v1811 = vpack.c.b16 %v1798, %v1797
  %v1812 = vpack.c.b16 %v1800, %v1799
  %v1813 = vpack.c.b16 %v1802, %v1801
  %v1814 = vpack.c.b16 %v1804, %v1803
  %v1815 = vpack.c.b16 %v1806, %v1805
  %v1816 = vpack.c.b16 %v1808, %v1807
  %1825 = vmatprep.subr.bf16.mxu0 0
  %1826 = vmatpush1.bf16.msra.mxu0 %v1809
  %1827 = vmatprep.subr.bf16.mxu0 0
  %1828 = vmatpush1.bf16.msra.mxu0 %v1810
  %1829 = vmatprep.subr.bf16.mxu0 0
  %1830 = vmatpush1.bf16.msra.mxu0 %v1811
  %1831 = vmatprep.subr.bf16.mxu0 0
  %1832 = vmatpush1.bf16.msra.mxu0 %v1812
  %1833 = vmatprep.subr.bf16.mxu0 0
  %1834 = vmatpush1.bf16.msra.mxu0 %v1813
  %1835 = vmatprep.subr.bf16.mxu0 0
  %1836 = vmatpush1.bf16.msra.mxu0 %v1814
  %1837 = vmatprep.subr.bf16.mxu0 0
  %1838 = vmatpush1.bf16.msra.mxu0 %v1815
  %1839 = vmatprep.subr.bf16.mxu0 0
  %1840 = vmatpush1.bf16.msra.mxu0 %v1816
  %1841 = vmatprep.subr.bf16.mxu0 0
  %1842 = vmatpush1.bf16.msra.mxu0 0
  %1843 = vmatprep.subr.bf16.mxu0 0
  %1844 = vmatpush1.bf16.msra.mxu0 0
  %1845 = vmatprep.subr.bf16.mxu0 0
  %1846 = vmatpush1.bf16.msra.mxu0 0
  %1847 = vmatprep.subr.bf16.mxu0 0
  %1848 = vmatpush1.bf16.msra.mxu0 0
  %1849 = vmatprep.subr.bf16.mxu0 0
  %1850 = vmatpush1.bf16.msra.mxu0 0
  %1851 = vmatprep.subr.bf16.mxu0 0
  %1852 = vmatpush1.bf16.msra.mxu0 0
  %1853 = vmatprep.subr.bf16.mxu0 0
  %1854 = vmatpush1.bf16.msra.mxu0 0
  %1855 = vmatprep.subr.bf16.mxu0 0
  %1856 = vmatpush1.bf16.msra.mxu0 0
  %1857 = vmatprep.mubr.bf16.mxu0 0
  %1858 = vmatmul.mubr.bf16.gmra.mrb[0].mxu0 %v1691
  %v1859 = vpop.f32.mrb[0].mxu0
  %v1860 = vadd.f32 0.0, %v1859
  %v1861 = vpop.f32.mrb[0].mxu0
  %v1862 = vpop.f32.mrb[0].mxu0
  %v1863 = vadd.f32 0.0, %v1862
  %v1864 = vpop.f32.mrb[0].mxu0
  %1865 = vmatprep.mubr.bf16.mxu0 0
  %1866 = vmatmul.mubr.bf16.gmra.mrb[0].mxu0 %v1692
  %v1867 = vpop.f32.mrb[0].mxu0
  %v1868 = vadd.f32 0.0, %v1867
  %v1869 = vpop.f32.mrb[0].mxu0
  %v1870 = vpop.f32.mrb[0].mxu0
  %v1871 = vadd.f32 0.0, %v1870
  %v1872 = vpop.f32.mrb[0].mxu0
  %1873 = vdwg.mxu0
  %v1890 = vunpack.c.l.b16 %v1744
  %v1891 = vunpack.c.l.b16 %v1745
  %v1892 = vunpack.c.l.b16 %v1746
  %v1893 = vunpack.c.l.b16 %v1747
  %v1894 = vunpack.c.l.b16 %v1748
  %v1895 = vunpack.c.l.b16 %v1749
  %v1896 = vunpack.c.l.b16 %v1750
  %v1897 = vunpack.c.l.b16 %v1751
  %v1898 = vunpack.c.l.b16 %v1752
  %v1899 = vunpack.c.l.b16 %v1753
  %v1900 = vunpack.c.l.b16 %v1754
  %v1901 = vunpack.c.l.b16 %v1755
  %v1902 = vunpack.c.l.b16 %v1756
  %v1903 = vunpack.c.l.b16 %v1757
  %v1904 = vunpack.c.l.b16 %v1758
  %v1905 = vunpack.c.l.b16 %v1759
  %v1906 = vpack.c.b16 %v1891, %v1890
  %v1907 = vpack.c.b16 %v1893, %v1892
  %v1908 = vpack.c.b16 %v1895, %v1894
  %v1909 = vpack.c.b16 %v1897, %v1896
  %v1910 = vpack.c.b16 %v1899, %v1898
  %v1911 = vpack.c.b16 %v1901, %v1900
  %v1912 = vpack.c.b16 %v1903, %v1902
  %v1913 = vpack.c.b16 %v1905, %v1904
  %1922 = vmatprep.subr.bf16.mxu0 0
  %1923 = vmatpush1.bf16.msra.mxu0 %v1906
  %1924 = vmatprep.subr.bf16.mxu0 0
  %1925 = vmatpush1.bf16.msra.mxu0 %v1907
  %1926 = vmatprep.subr.bf16.mxu0 0
  %1927 = vmatpush1.bf16.msra.mxu0 %v1908
  %1928 = vmatprep.subr.bf16.mxu0 0
  %1929 = vmatpush1.bf16.msra.mxu0 %v1909
  %1930 = vmatprep.subr.bf16.mxu0 0
  %1931 = vmatpush1.bf16.msra.mxu0 %v1910
  %1932 = vmatprep.subr.bf16.mxu0 0
  %1933 = vmatpush1.bf16.msra.mxu0 %v1911
  %1934 = vmatprep.subr.bf16.mxu0 0
  %1935 = vmatpush1.bf16.msra.mxu0 %v1912
  %1936 = vmatprep.subr.bf16.mxu0 0
  %1937 = vmatpush1.bf16.msra.mxu0 %v1913
  %1938 = vmatprep.subr.bf16.mxu0 0
  %1939 = vmatpush1.bf16.msra.mxu0 0
  %1940 = vmatprep.subr.bf16.mxu0 0
  %1941 = vmatpush1.bf16.msra.mxu0 0
  %1942 = vmatprep.subr.bf16.mxu0 0
  %1943 = vmatpush1.bf16.msra.mxu0 0
  %1944 = vmatprep.subr.bf16.mxu0 0
  %1945 = vmatpush1.bf16.msra.mxu0 0
  %1946 = vmatprep.subr.bf16.mxu0 0
  %1947 = vmatpush1.bf16.msra.mxu0 0
  %1948 = vmatprep.subr.bf16.mxu0 0
  %1949 = vmatpush1.bf16.msra.mxu0 0
  %1950 = vmatprep.subr.bf16.mxu0 0
  %1951 = vmatpush1.bf16.msra.mxu0 0
  %1952 = vmatprep.subr.bf16.mxu0 0
  %1953 = vmatpush1.bf16.msra.mxu0 0
  %1954 = vmatprep.mubr.bf16.mxu0 0
  %1955 = vmatmul.mubr.bf16.gmra.mrb[0].mxu0 %v1742
  %v1956 = vpop.f32.mrb[0].mxu0
  %v1957 = vadd.f32 %v1860, %v1956
  %v1958 = vpop.f32.mrb[0].mxu0
  %v1959 = vpop.f32.mrb[0].mxu0
  %v1960 = vadd.f32 %v1863, %v1959
  %v1961 = vpop.f32.mrb[0].mxu0
  %1962 = vmatprep.mubr.bf16.mxu0 0
  %1963 = vmatmul.mubr.bf16.gmra.mrb[0].mxu0 %v1743
  %v1964 = vpop.f32.mrb[0].mxu0
  %v1965 = vadd.f32 %v1868, %v1964
  %v1966 = vpop.f32.mrb[0].mxu0
  %v1967 = vpop.f32.mrb[0].mxu0
  %v1968 = vadd.f32 %v1871, %v1967
  %v1969 = vpop.f32.mrb[0].mxu0
  %1970 = vdwg.mxu0
  %v1971 = vld [vmem:[%s15] sm:$0x1]
  %v1973 = vlaneseq
  %v1974 = vshrl.u32 %v1973, 7
  %v1975 = vsub.s32 0, %v1974
  %v1976 = vrot.slane %v1971, %v1975
  %v1978 = vadd.f32 %v1957, %v1976
  %v1979 = vadd.f32 %v1960, %v1976
  %v1980 = vadd.f32 %v1965, %v1976
  %v1981 = vadd.f32 %v1968, %v1976
  %v1982 = vmax.f32 %v1978, 0.0
  %v1983 = vmax.f32 %v1979, 0.0
  %v1984 = vmax.f32 %v1980, 0.0
  %v1985 = vmax.f32 %v1981, 0.0
  %v1986 = vadd.f32 %v1982, %v1372
  %v1987 = vadd.f32 %v1983, %v1373
  %v1988 = vadd.f32 %v1984, %v1374
  %v1989 = vadd.f32 %v1985, %v1375
  %v1990 = vmax.f32 %v1986, 0.0
  %v1991 = vmax.f32 %v1987, 0.0
  %v1992 = vmax.f32 %v1988, 0.0
  %v1993 = vmax.f32 %v1989, 0.0
  %1994 = vst [vmem:[%s16] sm:$0xff] %v1990
  %1995 = vst [vmem:[%s16 + $0x8] sm:$0xff] %v1991
  %1996 = vst [vmem:[%s16 + $0x10] sm:$0xff] %v1992
  %1997 = vst [vmem:[%s16 + $0x18] sm:$0xff] %v1993
  // Predicated region
  $region66: #{_lambda_.1} parent=0 // pred_check
    _
  $region67: #{_lambda_.1} parent=0 // pred_check_branch
    %1999 = sbr.rel (0) target = $region69
  $region68: #{_lambda_.1} parent=0 // pred_region
    _
  $region69: #{_lambda_.1} parent=0 // pred_fallthru
    _
  // Predicated region
  $region70: #{_lambda_.1} parent=0 // pred_check
    _
  $region71: #{_lambda_.1} parent=0 // pred_check_branch
    %2001 = sbr.rel (0) target = $region73
  $region72: #{_lambda_.1} parent=0 // pred_region
    _
  $region73: #{_lambda_.1} parent=0 // pred_fallthru
    _

</llo_original>
